<compile_context>
chip_gen: v7x
topology: tpu7x:2x2x1
jax: 0.10.0
libtpu: 0.0.40
codegen_flags: <defaults>
</compile_context>

<pallas_src>
import functools

import jax
import jax.numpy as jnp
from jax import lax
from jax.experimental import pallas as pl
from jax.experimental.pallas import tpu as pltpu

NUM_LABELS = 8               # T — number of tags (incl. CLS / SEP)
SEQ_LEN = 8                  # L — sequence length
FLAG_CLS = NUM_LABELS - 2    # start tag
FLAG_SEP = NUM_LABELS - 1    # stop tag

CHUNK = 128                  # lanes per compute chunk (one full lane dimension)
MAX_LANE_BATCH = 1024        # max sequences per grid step


def _crf_fwd_kernel(trans_ref, trans_t_ref, feats_ref, tags_ref, out_ref, *,
                    seq_len, num_labels, flag_cls, flag_sep, chunks_per_step):
    """Per grid step: `chunks_per_step` chunks of 128 sequences.

    trans_ref   : (T, T) f32, transitions[next, prev]
    trans_t_ref : (T, T) f32, transitions[next, prev].T  (only SEP column used)
    feats_ref   : (cps, L, T, 128) f32 emissions (labels on sublanes, seqs on lanes)
    tags_ref    : (cps, L, 128) int32 gold tags
    out_ref     : (cps, 1, 128) f32, (forward partition score - gold emission score)
    """
    T = num_labels
    C = CHUNK

    trans = trans_ref[...]                         # (T, T)
    trans_t = trans_t_ref[...]                     # (T, T)
    exp_trans = jnp.exp(trans)                     # exp(-10000) underflows to 0

    # ---- hoisted loop invariants (resident vregs across chunk & time loops) ----
    # exp_cols[p][n, b] = exp(transitions[n, p])  -> 8 lane-broadcasts, once.
    exp_cols = [jnp.broadcast_to(exp_trans[:, p:p + 1], (T, C)) for p in range(T)]
    # sep_b[p, b] = transitions[FLAG_SEP, p]
    sep_b = jnp.broadcast_to(trans_t[:, flag_sep:flag_sep + 1], (T, C))
    lbl_iota = lax.broadcasted_iota(jnp.int32, (T, C), 0)
    alpha0 = jnp.where(lbl_iota == flag_cls, 0.0, -10000.0).astype(jnp.float32)

    @pl.loop(0, chunks_per_step)
    def _chunk(c):
        tags_c = tags_ref[c]                       # (L, 128) — one int32 vreg
        alpha = alpha0                             # (T, 128) forward log-scores
        gacc = jnp.zeros((T, C), jnp.float32)      # deferred gold-emission accumulator

        # Fully unrolled time recursion (seq_len is a compile-time constant).
        for i in range(seq_len):
            feat_i = feats_ref[c, i]                               # (T, 128)
            is_tag = tags_c[i:i + 1, :] == lbl_iota                # (T, 128)
            gacc = gacc + jnp.where(is_tag, feat_i, 0.0)           # gold emission

            # log-sum-exp over previous tags via outer products (VALU work):
            #   summed[n, b] = sum_p exp(trans[n, p]) * exp(alpha[p, b] - a_max[b])
            a_max = jnp.max(alpha, axis=0, keepdims=True)          # (1, 128)
            e_alpha = jnp.exp(alpha - a_max)                       # (T, 128)
            summed = exp_cols[0] * e_alpha[0:1, :]
            for p in range(1, T):
                summed = summed + exp_cols[p] * e_alpha[p:p + 1, :]
            # Floor keeps the structurally-dead CLS row finite (exp(-10000)==0);
            # its downstream contribution is < 1e-36, matching the reference.
            summed = jnp.maximum(summed, 1e-37)
            alpha = a_max + jnp.log(summed) + feat_i               # (T, 128)

        # Terminal transition to SEP -> log-partition score.
        terminal = alpha + sep_b                                   # (T, 128)
        t_max = jnp.max(terminal, axis=0, keepdims=True)
        fwd = t_max + jnp.log(
            jnp.sum(jnp.exp(terminal - t_max), axis=0, keepdims=True))  # (1, 128)

        # Single deferred reduce for the gold emission score.
        gold_emit = jnp.sum(gacc, axis=0, keepdims=True)           # (1, 128)

        out_ref[c] = fwd - gold_emit


def _pick_lane_batch(batch, max_lane_batch=MAX_LANE_BATCH):
    """Multiple of 128, capped, and chosen so the grid has >=2 steps when possible
    (keeps both TensorCores busy on v7x)."""
    tiles = pl.cdiv(batch, CHUNK)
    per_step = max(1, pl.cdiv(tiles, 2))
    return int(min(max_lane_batch, CHUNK * per_step))


def _crf_pallas_call(trans, trans_t, feats_c, tags_c, chunks_per_step):
    n_tiles, L, T, _ = feats_c.shape
    grid = (n_tiles // chunks_per_step,)
    kernel = functools.partial(
        _crf_fwd_kernel, seq_len=L, num_labels=T,
        flag_cls=T - 2, flag_sep=T - 1, chunks_per_step=chunks_per_step)
    return pl.pallas_call(
        kernel,
        out_shape=jax.ShapeDtypeStruct((n_tiles, 1, CHUNK), jnp.float32),
        grid_spec=pltpu.PrefetchScalarGridSpec(
            num_scalar_prefetch=0,
            grid=grid,
            in_specs=[
                # the two tiny transition matrices stay resident in VMEM
                pl.BlockSpec((T, T), lambda g: (0, 0)),
                pl.BlockSpec((T, T), lambda g: (0, 0)),
                # chunk index on a leading axis; last two dims are (8, 128)
                pl.BlockSpec((chunks_per_step, L, T, CHUNK), lambda g: (g, 0, 0, 0)),
                pl.BlockSpec((chunks_per_step, L, CHUNK), lambda g: (g, 0, 0)),
            ],
            out_specs=pl.BlockSpec((chunks_per_step, 1, CHUNK), lambda g: (g, 0, 0)),
        ),
        compiler_params=pltpu.CompilerParams(
            # batch tiles are independent -> sharded across the 2 TCs on v7x
            dimension_semantics=("parallel",)),
    )(trans, trans_t, feats_c, tags_c)


def crf_loss_batched(transitions, feats, tags, *, lane_batch=None):
    """Batched CRF loss. feats: (B, L, T), tags: (B, L) -> loss (B,) f32."""
    B, L, T = feats.shape
    flag_cls, flag_sep = T - 2, T - 1
    if lane_batch is None:
        lane_batch = _pick_lane_batch(B)
    cps = lane_batch // CHUNK
    n_tiles = cps * pl.cdiv(pl.cdiv(B, CHUNK), cps)
    Bp = CHUNK * n_tiles
    pad = Bp - B

    trans = transitions.astype(jnp.float32)
    feats_p = jnp.pad(feats.astype(jnp.float32), ((0, pad), (0, 0), (0, 0)))
    tags_p = jnp.pad(tags.astype(jnp.int32), ((0, pad), (0, 0)))

    # Kernel layout: (n_tiles, L, T, 128) — labels on sublanes, sequences on lanes.
    # (For very large B, produce this layout upstream to avoid the extra transpose pass.)
    feats_c = feats_p.reshape(n_tiles, CHUNK, L, T).transpose(0, 2, 3, 1)
    tags_c = tags_p.reshape(n_tiles, CHUNK, L).transpose(0, 2, 1)

    out = _crf_pallas_call(trans, trans.T, feats_c, tags_c, cps)   # (n_tiles, 1, 128)
    fwd_minus_emit = out.reshape(Bp)

    # Gold transition score: tiny XLA gather over the TxT table (moved out of the
    # kernel per the perf review; removes 8+ sublane reduces per time step).
    full_tags = jnp.concatenate(
        [jnp.full((Bp, 1), flag_cls, jnp.int32), tags_p], axis=1)
    gtrans = jnp.sum(trans[full_tags[:, 1:], full_tags[:, :-1]], axis=1)
    gtrans = gtrans + trans[flag_sep, full_tags[:, -1]]

    return (fwd_minus_emit - gtrans)[:B]


def crf_loss(transitions, feats, tags):
    """Single-sequence loss matching CustomCrfAlg.forward (returns shape (1,))."""
    return crf_loss_batched(transitions, feats[None], tags[None])


def crf_loss_ref(transitions, feats, tags):
    """Pure-JAX batched reference mirroring the PyTorch loops.

    feats: (B, L, T), tags: (B, L) -> (B,)
    """
    B, L, T = feats.shape
    transitions = transitions.astype(jnp.float32)
    feats = feats.astype(jnp.float32)
    tags = tags.astype(jnp.int32)

    alpha = jnp.full((B, T), -10000.0, jnp.float32).at[:, FLAG_CLS].set(0.0)
    for i in range(L):
        m = alpha[:, None, :] + transitions[None, :, :] + feats[:, i, :, None]
        alpha = jax.scipy.special.logsumexp(m, axis=2)
    fwd = jax.scipy.special.logsumexp(alpha + transitions[FLAG_SEP][None, :], axis=1)

    full_tags = jnp.concatenate(
        [jnp.full((B, 1), FLAG_CLS, jnp.int32), tags], axis=1)
    score = jnp.zeros((B,), jnp.float32)
    rows = jnp.arange(B)
    for i in range(L):
        nxt = full_tags[:, i + 1]
        prv = full_tags[:, i]
        score = score + transitions[nxt, prv] + feats[rows, i, nxt]
    score = score + transitions[FLAG_SEP, full_tags[:, -1]]
    return fwd - score


if __name__ == "__main__":
    key = jax.random.PRNGKey(0)
    k_trans, k_feats, k_tags = jax.random.split(key, 3)

    # Deterministic parameter init (mirrors nn.Parameter(torch.randn(T, T))
    # plus the CLS/SEP masking in __init__).
    transitions = jax.random.normal(k_trans, (NUM_LABELS, NUM_LABELS), jnp.float32)
    transitions = transitions.at[FLAG_CLS, :].set(-10000.0)
    transitions = transitions.at[:, FLAG_SEP].set(-10000.0)

    # B=384 -> lane_batch=256, grid=(2,), 2 chunks/step, padded to 512:
    # exercises the wide-block chunk loop, padding, and the 2-step parallel grid.
    BATCH = 384
    feats = jax.random.normal(k_feats, (BATCH, SEQ_LEN, NUM_LABELS), jnp.float32)
    tags = jax.random.randint(k_tags, (BATCH, SEQ_LEN), 0, NUM_LABELS - 2, jnp.int32)

    loss = jax.block_until_ready(crf_loss_batched(transitions, feats, tags))
    loss_ref = jax.block_until_ready(crf_loss_ref(transitions, feats, tags))
    assert loss.shape == (BATCH,)
    assert jnp.allclose(loss, loss_ref, rtol=1e-4, atol=1e-3), (
        float(jnp.max(jnp.abs(loss - loss_ref))))

    # Single-sequence path (the module's forward signature: feats (L,T), tags (L,)).
    loss1 = jax.block_until_ready(crf_loss(transitions, feats[0], tags[0]))
    assert loss1.shape == (1,)
    assert jnp.allclose(loss1, loss_ref[:1], rtol=1e-4, atol=1e-3)

    print("KERNEL_OK")
</pallas_src>

<mosaic_0001>
module attributes {stable_mosaic.version = 11 : i64} {
  func.func @_crf_fwd_kernel(%arg0: i32, %arg1: memref<8x8xf32, #tpu.memory_space<vmem>>, %arg2: memref<8x8xf32, #tpu.memory_space<vmem>>, %arg3: memref<2x8x8x128xf32, #tpu.memory_space<vmem>>, %arg4: memref<2x8x128xi32, #tpu.memory_space<vmem>>, %arg5: memref<2x1x128xf32, #tpu.memory_space<vmem>>) attributes {dimension_semantics = [#tpu.dimension_semantics<parallel>], iteration_bounds = array<i64: 2>, scalar_prefetch = 0 : i64, scratch_operands = 0 : i64, tpu.core_type = #tpu.core_type<tc>, window_params = [{pipeline_mode = #tpu.pipeline_mode<synchronous>, transform_indices = @transform_0, window_bounds = array<i64: 8, 8>}, {pipeline_mode = #tpu.pipeline_mode<synchronous>, transform_indices = @transform_1, window_bounds = array<i64: 8, 8>}, {transform_indices = @transform_2, window_bounds = array<i64: 2, 8, 8, 128>}, {transform_indices = @transform_3, window_bounds = array<i64: 2, 8, 128>}, {transform_indices = @transform_4, window_bounds = array<i64: 2, 1, 128>}]} {
    %c0 = arith.constant 0 : index
    %c0_0 = arith.constant 0 : index
    %0 = vector.load %arg1[%c0, %c0_0] : memref<8x8xf32, #tpu.memory_space<vmem>>, vector<8x8xf32>
    %c0_1 = arith.constant 0 : index
    %c0_2 = arith.constant 0 : index
    %1 = vector.load %arg2[%c0_1, %c0_2] : memref<8x8xf32, #tpu.memory_space<vmem>>, vector<8x8xf32>
    %2 = math.exp %0 : vector<8x8xf32>
    %3 = vector.extract_strided_slice %2 {offsets = [0, 0], sizes = [8, 1], strides = [1, 1]} : vector<8x8xf32> to vector<8x1xf32>
    %4 = vector.shape_cast %3 : vector<8x1xf32> to vector<8x1xf32>
    %5 = vector.broadcast %4 : vector<8x1xf32> to vector<8x128xf32>
    %6 = vector.extract_strided_slice %2 {offsets = [0, 1], sizes = [8, 1], strides = [1, 1]} : vector<8x8xf32> to vector<8x1xf32>
    %7 = vector.shape_cast %6 : vector<8x1xf32> to vector<8x1xf32>
    %8 = vector.broadcast %7 : vector<8x1xf32> to vector<8x128xf32>
    %9 = vector.extract_strided_slice %2 {offsets = [0, 2], sizes = [8, 1], strides = [1, 1]} : vector<8x8xf32> to vector<8x1xf32>
    %10 = vector.shape_cast %9 : vector<8x1xf32> to vector<8x1xf32>
    %11 = vector.broadcast %10 : vector<8x1xf32> to vector<8x128xf32>
    %12 = vector.extract_strided_slice %2 {offsets = [0, 3], sizes = [8, 1], strides = [1, 1]} : vector<8x8xf32> to vector<8x1xf32>
    %13 = vector.shape_cast %12 : vector<8x1xf32> to vector<8x1xf32>
    %14 = vector.broadcast %13 : vector<8x1xf32> to vector<8x128xf32>
    %15 = vector.extract_strided_slice %2 {offsets = [0, 4], sizes = [8, 1], strides = [1, 1]} : vector<8x8xf32> to vector<8x1xf32>
    %16 = vector.shape_cast %15 : vector<8x1xf32> to vector<8x1xf32>
    %17 = vector.broadcast %16 : vector<8x1xf32> to vector<8x128xf32>
    %18 = vector.extract_strided_slice %2 {offsets = [0, 5], sizes = [8, 1], strides = [1, 1]} : vector<8x8xf32> to vector<8x1xf32>
    %19 = vector.shape_cast %18 : vector<8x1xf32> to vector<8x1xf32>
    %20 = vector.broadcast %19 : vector<8x1xf32> to vector<8x128xf32>
    %21 = vector.extract_strided_slice %2 {offsets = [0, 6], sizes = [8, 1], strides = [1, 1]} : vector<8x8xf32> to vector<8x1xf32>
    %22 = vector.shape_cast %21 : vector<8x1xf32> to vector<8x1xf32>
    %23 = vector.broadcast %22 : vector<8x1xf32> to vector<8x128xf32>
    %24 = vector.extract_strided_slice %2 {offsets = [0, 7], sizes = [8, 1], strides = [1, 1]} : vector<8x8xf32> to vector<8x1xf32>
    %25 = vector.shape_cast %24 : vector<8x1xf32> to vector<8x1xf32>
    %26 = vector.broadcast %25 : vector<8x1xf32> to vector<8x128xf32>
    %27 = vector.extract_strided_slice %1 {offsets = [0, 7], sizes = [8, 1], strides = [1, 1]} : vector<8x8xf32> to vector<8x1xf32>
    %28 = vector.shape_cast %27 : vector<8x1xf32> to vector<8x1xf32>
    %29 = vector.broadcast %28 : vector<8x1xf32> to vector<8x128xf32>
    %30 = tpu.iota {dimensions = array<i32: 0>} : vector<8x128xi32>
    %c6_i32 = arith.constant 6 : i32
    %31 = vector.broadcast %c6_i32 : i32 to vector<8x128xi32>
    %32 = arith.cmpi eq, %30, %31 : vector<8x128xi32>
    %cst = arith.constant 0.000000e+00 : f32
    %cst_3 = arith.constant -1.000000e+04 : f32
    %33 = vector.broadcast %cst : f32 to vector<8x128xf32>
    %34 = vector.broadcast %cst_3 : f32 to vector<8x128xf32>
    %35 = arith.select %32, %33, %34 : vector<8x128xi1>, vector<8x128xf32>
    %c0_i32 = arith.constant 0 : i32
    %c2_i32 = arith.constant 2 : i32
    %36 = arith.addi %c0_i32, %c2_i32 : i32
    %c1_i32 = arith.constant 1 : i32
    scf.for %arg6 = %c0_i32 to %36 step %c1_i32  : i32 {
      %c1_i32_5 = arith.constant 1 : i32
      %37 = arith.muli %arg6, %c1_i32_5 : i32
      %c0_i32_6 = arith.constant 0 : i32
      %38 = arith.addi %c0_i32_6, %37 : i32
      %39 = arith.index_cast %38 : i32 to index
      %c0_7 = arith.constant 0 : index
      %c0_8 = arith.constant 0 : index
      %40 = vector.load %arg4[%39, %c0_7, %c0_8] : memref<2x8x128xi32, #tpu.memory_space<vmem>>, vector<1x8x128xi32>
      %41 = vector.shape_cast %40 : vector<1x8x128xi32> to vector<8x128xi32>
      %cst_9 = arith.constant 0.000000e+00 : f32
      %42 = vector.broadcast %cst_9 : f32 to vector<8x128xf32>
      %43 = arith.index_cast %38 : i32 to index
      %c0_10 = arith.constant 0 : index
      %c0_11 = arith.constant 0 : index
      %c0_12 = arith.constant 0 : index
      %44 = vector.load %arg3[%43, %c0_10, %c0_11, %c0_12] : memref<2x8x8x128xf32, #tpu.memory_space<vmem>>, vector<1x1x8x128xf32>
      %45 = vector.shape_cast %44 : vector<1x1x8x128xf32> to vector<8x128xf32>
      %46 = vector.extract_strided_slice %41 {offsets = [0, 0], sizes = [1, 128], strides = [1, 1]} : vector<8x128xi32> to vector<1x128xi32>
      %47 = vector.broadcast %46 : vector<1x128xi32> to vector<8x128xi32>
      %48 = arith.cmpi eq, %47, %30 : vector<8x128xi32>
      %cst_13 = arith.constant 0.000000e+00 : f32
      %49 = vector.broadcast %cst_13 : f32 to vector<8x128xf32>
      %50 = arith.select %48, %45, %49 : vector<8x128xi1>, vector<8x128xf32>
      %51 = arith.addf %42, %50 : vector<8x128xf32>
      %cst_14 = arith.constant dense<0xFF800000> : vector<128xf32>
      %52 = vector.multi_reduction <maximumf>, %35, %cst_14 [0] : vector<8x128xf32> to vector<128xf32>
      %53 = vector.shape_cast %52 : vector<128xf32> to vector<1x128xf32>
      %54 = vector.broadcast %53 : vector<1x128xf32> to vector<8x128xf32>
      %55 = arith.subf %35, %54 : vector<8x128xf32>
      %56 = math.exp %55 : vector<8x128xf32>
      %57 = vector.extract_strided_slice %56 {offsets = [0, 0], sizes = [1, 128], strides = [1, 1]} : vector<8x128xf32> to vector<1x128xf32>
      %58 = vector.broadcast %57 : vector<1x128xf32> to vector<8x128xf32>
      %59 = arith.mulf %5, %58 : vector<8x128xf32>
      %60 = vector.extract_strided_slice %56 {offsets = [1, 0], sizes = [1, 128], strides = [1, 1]} : vector<8x128xf32> to vector<1x128xf32>
      %61 = vector.broadcast %60 : vector<1x128xf32> to vector<8x128xf32>
      %62 = arith.mulf %8, %61 : vector<8x128xf32>
      %63 = arith.addf %59, %62 : vector<8x128xf32>
      %64 = vector.extract_strided_slice %56 {offsets = [2, 0], sizes = [1, 128], strides = [1, 1]} : vector<8x128xf32> to vector<1x128xf32>
      %65 = vector.broadcast %64 : vector<1x128xf32> to vector<8x128xf32>
      %66 = arith.mulf %11, %65 : vector<8x128xf32>
      %67 = arith.addf %63, %66 : vector<8x128xf32>
      %68 = vector.extract_strided_slice %56 {offsets = [3, 0], sizes = [1, 128], strides = [1, 1]} : vector<8x128xf32> to vector<1x128xf32>
      %69 = vector.broadcast %68 : vector<1x128xf32> to vector<8x128xf32>
      %70 = arith.mulf %14, %69 : vector<8x128xf32>
      %71 = arith.addf %67, %70 : vector<8x128xf32>
      %72 = vector.extract_strided_slice %56 {offsets = [4, 0], sizes = [1, 128], strides = [1, 1]} : vector<8x128xf32> to vector<1x128xf32>
      %73 = vector.broadcast %72 : vector<1x128xf32> to vector<8x128xf32>
      %74 = arith.mulf %17, %73 : vector<8x128xf32>
      %75 = arith.addf %71, %74 : vector<8x128xf32>
      %76 = vector.extract_strided_slice %56 {offsets = [5, 0], sizes = [1, 128], strides = [1, 1]} : vector<8x128xf32> to vector<1x128xf32>
      %77 = vector.broadcast %76 : vector<1x128xf32> to vector<8x128xf32>
      %78 = arith.mulf %20, %77 : vector<8x128xf32>
      %79 = arith.addf %75, %78 : vector<8x128xf32>
      %80 = vector.extract_strided_slice %56 {offsets = [6, 0], sizes = [1, 128], strides = [1, 1]} : vector<8x128xf32> to vector<1x128xf32>
      %81 = vector.broadcast %80 : vector<1x128xf32> to vector<8x128xf32>
      %82 = arith.mulf %23, %81 : vector<8x128xf32>
      %83 = arith.addf %79, %82 : vector<8x128xf32>
      %84 = vector.extract_strided_slice %56 {offsets = [7, 0], sizes = [1, 128], strides = [1, 1]} : vector<8x128xf32> to vector<1x128xf32>
      %85 = vector.broadcast %84 : vector<1x128xf32> to vector<8x128xf32>
      %86 = arith.mulf %26, %85 : vector<8x128xf32>
      %87 = arith.addf %83, %86 : vector<8x128xf32>
      %cst_15 = arith.constant 9.99999991E-38 : f32
      %88 = vector.broadcast %cst_15 : f32 to vector<8x128xf32>
      %89 = arith.maximumf %87, %88 : vector<8x128xf32>
      %90 = math.log %89 : vector<8x128xf32>
      %91 = vector.broadcast %53 : vector<1x128xf32> to vector<8x128xf32>
      %92 = arith.addf %91, %90 : vector<8x128xf32>
      %93 = arith.addf %92, %45 : vector<8x128xf32>
      %94 = arith.index_cast %38 : i32 to index
      %c1 = arith.constant 1 : index
      %c0_16 = arith.constant 0 : index
      %c0_17 = arith.constant 0 : index
      %95 = vector.load %arg3[%94, %c1, %c0_16, %c0_17] : memref<2x8x8x128xf32, #tpu.memory_space<vmem>>, vector<1x1x8x128xf32>
      %96 = vector.shape_cast %95 : vector<1x1x8x128xf32> to vector<8x128xf32>
      %97 = vector.extract_strided_slice %41 {offsets = [1, 0], sizes = [1, 128], strides = [1, 1]} : vector<8x128xi32> to vector<1x128xi32>
      %98 = vector.broadcast %97 : vector<1x128xi32> to vector<8x128xi32>
      %99 = arith.cmpi eq, %98, %30 : vector<8x128xi32>
      %cst_18 = arith.constant 0.000000e+00 : f32
      %100 = vector.broadcast %cst_18 : f32 to vector<8x128xf32>
      %101 = arith.select %99, %96, %100 : vector<8x128xi1>, vector<8x128xf32>
      %102 = arith.addf %51, %101 : vector<8x128xf32>
      %cst_19 = arith.constant dense<0xFF800000> : vector<128xf32>
      %103 = vector.multi_reduction <maximumf>, %93, %cst_19 [0] : vector<8x128xf32> to vector<128xf32>
      %104 = vector.shape_cast %103 : vector<128xf32> to vector<1x128xf32>
      %105 = vector.broadcast %104 : vector<1x128xf32> to vector<8x128xf32>
      %106 = arith.subf %93, %105 : vector<8x128xf32>
      %107 = math.exp %106 : vector<8x128xf32>
      %108 = vector.extract_strided_slice %107 {offsets = [0, 0], sizes = [1, 128], strides = [1, 1]} : vector<8x128xf32> to vector<1x128xf32>
      %109 = vector.broadcast %108 : vector<1x128xf32> to vector<8x128xf32>
      %110 = arith.mulf %5, %109 : vector<8x128xf32>
      %111 = vector.extract_strided_slice %107 {offsets = [1, 0], sizes = [1, 128], strides = [1, 1]} : vector<8x128xf32> to vector<1x128xf32>
      %112 = vector.broadcast %111 : vector<1x128xf32> to vector<8x128xf32>
      %113 = arith.mulf %8, %112 : vector<8x128xf32>
      %114 = arith.addf %110, %113 : vector<8x128xf32>
      %115 = vector.extract_strided_slice %107 {offsets = [2, 0], sizes = [1, 128], strides = [1, 1]} : vector<8x128xf32> to vector<1x128xf32>
      %116 = vector.broadcast %115 : vector<1x128xf32> to vector<8x128xf32>
      %117 = arith.mulf %11, %116 : vector<8x128xf32>
      %118 = arith.addf %114, %117 : vector<8x128xf32>
      %119 = vector.extract_strided_slice %107 {offsets = [3, 0], sizes = [1, 128], strides = [1, 1]} : vector<8x128xf32> to vector<1x128xf32>
      %120 = vector.broadcast %119 : vector<1x128xf32> to vector<8x128xf32>
      %121 = arith.mulf %14, %120 : vector<8x128xf32>
      %122 = arith.addf %118, %121 : vector<8x128xf32>
      %123 = vector.extract_strided_slice %107 {offsets = [4, 0], sizes = [1, 128], strides = [1, 1]} : vector<8x128xf32> to vector<1x128xf32>
      %124 = vector.broadcast %123 : vector<1x128xf32> to vector<8x128xf32>
      %125 = arith.mulf %17, %124 : vector<8x128xf32>
      %126 = arith.addf %122, %125 : vector<8x128xf32>
      %127 = vector.extract_strided_slice %107 {offsets = [5, 0], sizes = [1, 128], strides = [1, 1]} : vector<8x128xf32> to vector<1x128xf32>
      %128 = vector.broadcast %127 : vector<1x128xf32> to vector<8x128xf32>
      %129 = arith.mulf %20, %128 : vector<8x128xf32>
      %130 = arith.addf %126, %129 : vector<8x128xf32>
      %131 = vector.extract_strided_slice %107 {offsets = [6, 0], sizes = [1, 128], strides = [1, 1]} : vector<8x128xf32> to vector<1x128xf32>
      %132 = vector.broadcast %131 : vector<1x128xf32> to vector<8x128xf32>
      %133 = arith.mulf %23, %132 : vector<8x128xf32>
      %134 = arith.addf %130, %133 : vector<8x128xf32>
      %135 = vector.extract_strided_slice %107 {offsets = [7, 0], sizes = [1, 128], strides = [1, 1]} : vector<8x128xf32> to vector<1x128xf32>
      %136 = vector.broadcast %135 : vector<1x128xf32> to vector<8x128xf32>
      %137 = arith.mulf %26, %136 : vector<8x128xf32>
      %138 = arith.addf %134, %137 : vector<8x128xf32>
      %cst_20 = arith.constant 9.99999991E-38 : f32
      %139 = vector.broadcast %cst_20 : f32 to vector<8x128xf32>
      %140 = arith.maximumf %138, %139 : vector<8x128xf32>
      %141 = math.log %140 : vector<8x128xf32>
      %142 = vector.broadcast %104 : vector<1x128xf32> to vector<8x128xf32>
      %143 = arith.addf %142, %141 : vector<8x128xf32>
      %144 = arith.addf %143, %96 : vector<8x128xf32>
      %145 = arith.index_cast %38 : i32 to index
      %c2 = arith.constant 2 : index
      %c0_21 = arith.constant 0 : index
      %c0_22 = arith.constant 0 : index
      %146 = vector.load %arg3[%145, %c2, %c0_21, %c0_22] : memref<2x8x8x128xf32, #tpu.memory_space<vmem>>, vector<1x1x8x128xf32>
      %147 = vector.shape_cast %146 : vector<1x1x8x128xf32> to vector<8x128xf32>
      %148 = vector.extract_strided_slice %41 {offsets = [2, 0], sizes = [1, 128], strides = [1, 1]} : vector<8x128xi32> to vector<1x128xi32>
      %149 = vector.broadcast %148 : vector<1x128xi32> to vector<8x128xi32>
      %150 = arith.cmpi eq, %149, %30 : vector<8x128xi32>
      %cst_23 = arith.constant 0.000000e+00 : f32
      %151 = vector.broadcast %cst_23 : f32 to vector<8x128xf32>
      %152 = arith.select %150, %147, %151 : vector<8x128xi1>, vector<8x128xf32>
      %153 = arith.addf %102, %152 : vector<8x128xf32>
      %cst_24 = arith.constant dense<0xFF800000> : vector<128xf32>
      %154 = vector.multi_reduction <maximumf>, %144, %cst_24 [0] : vector<8x128xf32> to vector<128xf32>
      %155 = vector.shape_cast %154 : vector<128xf32> to vector<1x128xf32>
      %156 = vector.broadcast %155 : vector<1x128xf32> to vector<8x128xf32>
      %157 = arith.subf %144, %156 : vector<8x128xf32>
      %158 = math.exp %157 : vector<8x128xf32>
      %159 = vector.extract_strided_slice %158 {offsets = [0, 0], sizes = [1, 128], strides = [1, 1]} : vector<8x128xf32> to vector<1x128xf32>
      %160 = vector.broadcast %159 : vector<1x128xf32> to vector<8x128xf32>
      %161 = arith.mulf %5, %160 : vector<8x128xf32>
      %162 = vector.extract_strided_slice %158 {offsets = [1, 0], sizes = [1, 128], strides = [1, 1]} : vector<8x128xf32> to vector<1x128xf32>
      %163 = vector.broadcast %162 : vector<1x128xf32> to vector<8x128xf32>
      %164 = arith.mulf %8, %163 : vector<8x128xf32>
      %165 = arith.addf %161, %164 : vector<8x128xf32>
      %166 = vector.extract_strided_slice %158 {offsets = [2, 0], sizes = [1, 128], strides = [1, 1]} : vector<8x128xf32> to vector<1x128xf32>
      %167 = vector.broadcast %166 : vector<1x128xf32> to vector<8x128xf32>
      %168 = arith.mulf %11, %167 : vector<8x128xf32>
      %169 = arith.addf %165, %168 : vector<8x128xf32>
      %170 = vector.extract_strided_slice %158 {offsets = [3, 0], sizes = [1, 128], strides = [1, 1]} : vector<8x128xf32> to vector<1x128xf32>
      %171 = vector.broadcast %170 : vector<1x128xf32> to vector<8x128xf32>
      %172 = arith.mulf %14, %171 : vector<8x128xf32>
      %173 = arith.addf %169, %172 : vector<8x128xf32>
      %174 = vector.extract_strided_slice %158 {offsets = [4, 0], sizes = [1, 128], strides = [1, 1]} : vector<8x128xf32> to vector<1x128xf32>
      %175 = vector.broadcast %174 : vector<1x128xf32> to vector<8x128xf32>
      %176 = arith.mulf %17, %175 : vector<8x128xf32>
      %177 = arith.addf %173, %176 : vector<8x128xf32>
      %178 = vector.extract_strided_slice %158 {offsets = [5, 0], sizes = [1, 128], strides = [1, 1]} : vector<8x128xf32> to vector<1x128xf32>
      %179 = vector.broadcast %178 : vector<1x128xf32> to vector<8x128xf32>
      %180 = arith.mulf %20, %179 : vector<8x128xf32>
      %181 = arith.addf %177, %180 : vector<8x128xf32>
      %182 = vector.extract_strided_slice %158 {offsets = [6, 0], sizes = [1, 128], strides = [1, 1]} : vector<8x128xf32> to vector<1x128xf32>
      %183 = vector.broadcast %182 : vector<1x128xf32> to vector<8x128xf32>
      %184 = arith.mulf %23, %183 : vector<8x128xf32>
      %185 = arith.addf %181, %184 : vector<8x128xf32>
      %186 = vector.extract_strided_slice %158 {offsets = [7, 0], sizes = [1, 128], strides = [1, 1]} : vector<8x128xf32> to vector<1x128xf32>
      %187 = vector.broadcast %186 : vector<1x128xf32> to vector<8x128xf32>
      %188 = arith.mulf %26, %187 : vector<8x128xf32>
      %189 = arith.addf %185, %188 : vector<8x128xf32>
      %cst_25 = arith.constant 9.99999991E-38 : f32
      %190 = vector.broadcast %cst_25 : f32 to vector<8x128xf32>
      %191 = arith.maximumf %189, %190 : vector<8x128xf32>
      %192 = math.log %191 : vector<8x128xf32>
      %193 = vector.broadcast %155 : vector<1x128xf32> to vector<8x128xf32>
      %194 = arith.addf %193, %192 : vector<8x128xf32>
      %195 = arith.addf %194, %147 : vector<8x128xf32>
      %196 = arith.index_cast %38 : i32 to index
      %c3 = arith.constant 3 : index
      %c0_26 = arith.constant 0 : index
      %c0_27 = arith.constant 0 : index
      %197 = vector.load %arg3[%196, %c3, %c0_26, %c0_27] : memref<2x8x8x128xf32, #tpu.memory_space<vmem>>, vector<1x1x8x128xf32>
      %198 = vector.shape_cast %197 : vector<1x1x8x128xf32> to vector<8x128xf32>
      %199 = vector.extract_strided_slice %41 {offsets = [3, 0], sizes = [1, 128], strides = [1, 1]} : vector<8x128xi32> to vector<1x128xi32>
      %200 = vector.broadcast %199 : vector<1x128xi32> to vector<8x128xi32>
      %201 = arith.cmpi eq, %200, %30 : vector<8x128xi32>
      %cst_28 = arith.constant 0.000000e+00 : f32
      %202 = vector.broadcast %cst_28 : f32 to vector<8x128xf32>
      %203 = arith.select %201, %198, %202 : vector<8x128xi1>, vector<8x128xf32>
      %204 = arith.addf %153, %203 : vector<8x128xf32>
      %cst_29 = arith.constant dense<0xFF800000> : vector<128xf32>
      %205 = vector.multi_reduction <maximumf>, %195, %cst_29 [0] : vector<8x128xf32> to vector<128xf32>
      %206 = vector.shape_cast %205 : vector<128xf32> to vector<1x128xf32>
      %207 = vector.broadcast %206 : vector<1x128xf32> to vector<8x128xf32>
      %208 = arith.subf %195, %207 : vector<8x128xf32>
      %209 = math.exp %208 : vector<8x128xf32>
      %210 = vector.extract_strided_slice %209 {offsets = [0, 0], sizes = [1, 128], strides = [1, 1]} : vector<8x128xf32> to vector<1x128xf32>
      %211 = vector.broadcast %210 : vector<1x128xf32> to vector<8x128xf32>
      %212 = arith.mulf %5, %211 : vector<8x128xf32>
      %213 = vector.extract_strided_slice %209 {offsets = [1, 0], sizes = [1, 128], strides = [1, 1]} : vector<8x128xf32> to vector<1x128xf32>
      %214 = vector.broadcast %213 : vector<1x128xf32> to vector<8x128xf32>
      %215 = arith.mulf %8, %214 : vector<8x128xf32>
      %216 = arith.addf %212, %215 : vector<8x128xf32>
      %217 = vector.extract_strided_slice %209 {offsets = [2, 0], sizes = [1, 128], strides = [1, 1]} : vector<8x128xf32> to vector<1x128xf32>
      %218 = vector.broadcast %217 : vector<1x128xf32> to vector<8x128xf32>
      %219 = arith.mulf %11, %218 : vector<8x128xf32>
      %220 = arith.addf %216, %219 : vector<8x128xf32>
      %221 = vector.extract_strided_slice %209 {offsets = [3, 0], sizes = [1, 128], strides = [1, 1]} : vector<8x128xf32> to vector<1x128xf32>
      %222 = vector.broadcast %221 : vector<1x128xf32> to vector<8x128xf32>
      %223 = arith.mulf %14, %222 : vector<8x128xf32>
      %224 = arith.addf %220, %223 : vector<8x128xf32>
      %225 = vector.extract_strided_slice %209 {offsets = [4, 0], sizes = [1, 128], strides = [1, 1]} : vector<8x128xf32> to vector<1x128xf32>
      %226 = vector.broadcast %225 : vector<1x128xf32> to vector<8x128xf32>
      %227 = arith.mulf %17, %226 : vector<8x128xf32>
      %228 = arith.addf %224, %227 : vector<8x128xf32>
      %229 = vector.extract_strided_slice %209 {offsets = [5, 0], sizes = [1, 128], strides = [1, 1]} : vector<8x128xf32> to vector<1x128xf32>
      %230 = vector.broadcast %229 : vector<1x128xf32> to vector<8x128xf32>
      %231 = arith.mulf %20, %230 : vector<8x128xf32>
      %232 = arith.addf %228, %231 : vector<8x128xf32>
      %233 = vector.extract_strided_slice %209 {offsets = [6, 0], sizes = [1, 128], strides = [1, 1]} : vector<8x128xf32> to vector<1x128xf32>
      %234 = vector.broadcast %233 : vector<1x128xf32> to vector<8x128xf32>
      %235 = arith.mulf %23, %234 : vector<8x128xf32>
      %236 = arith.addf %232, %235 : vector<8x128xf32>
      %237 = vector.extract_strided_slice %209 {offsets = [7, 0], sizes = [1, 128], strides = [1, 1]} : vector<8x128xf32> to vector<1x128xf32>
      %238 = vector.broadcast %237 : vector<1x128xf32> to vector<8x128xf32>
      %239 = arith.mulf %26, %238 : vector<8x128xf32>
      %240 = arith.addf %236, %239 : vector<8x128xf32>
      %cst_30 = arith.constant 9.99999991E-38 : f32
      %241 = vector.broadcast %cst_30 : f32 to vector<8x128xf32>
      %242 = arith.maximumf %240, %241 : vector<8x128xf32>
      %243 = math.log %242 : vector<8x128xf32>
      %244 = vector.broadcast %206 : vector<1x128xf32> to vector<8x128xf32>
      %245 = arith.addf %244, %243 : vector<8x128xf32>
      %246 = arith.addf %245, %198 : vector<8x128xf32>
      %247 = arith.index_cast %38 : i32 to index
      %c4 = arith.constant 4 : index
      %c0_31 = arith.constant 0 : index
      %c0_32 = arith.constant 0 : index
      %248 = vector.load %arg3[%247, %c4, %c0_31, %c0_32] : memref<2x8x8x128xf32, #tpu.memory_space<vmem>>, vector<1x1x8x128xf32>
      %249 = vector.shape_cast %248 : vector<1x1x8x128xf32> to vector<8x128xf32>
      %250 = vector.extract_strided_slice %41 {offsets = [4, 0], sizes = [1, 128], strides = [1, 1]} : vector<8x128xi32> to vector<1x128xi32>
      %251 = vector.broadcast %250 : vector<1x128xi32> to vector<8x128xi32>
      %252 = arith.cmpi eq, %251, %30 : vector<8x128xi32>
      %cst_33 = arith.constant 0.000000e+00 : f32
      %253 = vector.broadcast %cst_33 : f32 to vector<8x128xf32>
      %254 = arith.select %252, %249, %253 : vector<8x128xi1>, vector<8x128xf32>
      %255 = arith.addf %204, %254 : vector<8x128xf32>
      %cst_34 = arith.constant dense<0xFF800000> : vector<128xf32>
      %256 = vector.multi_reduction <maximumf>, %246, %cst_34 [0] : vector<8x128xf32> to vector<128xf32>
      %257 = vector.shape_cast %256 : vector<128xf32> to vector<1x128xf32>
      %258 = vector.broadcast %257 : vector<1x128xf32> to vector<8x128xf32>
      %259 = arith.subf %246, %258 : vector<8x128xf32>
      %260 = math.exp %259 : vector<8x128xf32>
      %261 = vector.extract_strided_slice %260 {offsets = [0, 0], sizes = [1, 128], strides = [1, 1]} : vector<8x128xf32> to vector<1x128xf32>
      %262 = vector.broadcast %261 : vector<1x128xf32> to vector<8x128xf32>
      %263 = arith.mulf %5, %262 : vector<8x128xf32>
      %264 = vector.extract_strided_slice %260 {offsets = [1, 0], sizes = [1, 128], strides = [1, 1]} : vector<8x128xf32> to vector<1x128xf32>
      %265 = vector.broadcast %264 : vector<1x128xf32> to vector<8x128xf32>
      %266 = arith.mulf %8, %265 : vector<8x128xf32>
      %267 = arith.addf %263, %266 : vector<8x128xf32>
      %268 = vector.extract_strided_slice %260 {offsets = [2, 0], sizes = [1, 128], strides = [1, 1]} : vector<8x128xf32> to vector<1x128xf32>
      %269 = vector.broadcast %268 : vector<1x128xf32> to vector<8x128xf32>
      %270 = arith.mulf %11, %269 : vector<8x128xf32>
      %271 = arith.addf %267, %270 : vector<8x128xf32>
      %272 = vector.extract_strided_slice %260 {offsets = [3, 0], sizes = [1, 128], strides = [1, 1]} : vector<8x128xf32> to vector<1x128xf32>
      %273 = vector.broadcast %272 : vector<1x128xf32> to vector<8x128xf32>
      %274 = arith.mulf %14, %273 : vector<8x128xf32>
      %275 = arith.addf %271, %274 : vector<8x128xf32>
      %276 = vector.extract_strided_slice %260 {offsets = [4, 0], sizes = [1, 128], strides = [1, 1]} : vector<8x128xf32> to vector<1x128xf32>
      %277 = vector.broadcast %276 : vector<1x128xf32> to vector<8x128xf32>
      %278 = arith.mulf %17, %277 : vector<8x128xf32>
      %279 = arith.addf %275, %278 : vector<8x128xf32>
      %280 = vector.extract_strided_slice %260 {offsets = [5, 0], sizes = [1, 128], strides = [1, 1]} : vector<8x128xf32> to vector<1x128xf32>
      %281 = vector.broadcast %280 : vector<1x128xf32> to vector<8x128xf32>
      %282 = arith.mulf %20, %281 : vector<8x128xf32>
      %283 = arith.addf %279, %282 : vector<8x128xf32>
      %284 = vector.extract_strided_slice %260 {offsets = [6, 0], sizes = [1, 128], strides = [1, 1]} : vector<8x128xf32> to vector<1x128xf32>
      %285 = vector.broadcast %284 : vector<1x128xf32> to vector<8x128xf32>
      %286 = arith.mulf %23, %285 : vector<8x128xf32>
      %287 = arith.addf %283, %286 : vector<8x128xf32>
      %288 = vector.extract_strided_slice %260 {offsets = [7, 0], sizes = [1, 128], strides = [1, 1]} : vector<8x128xf32> to vector<1x128xf32>
      %289 = vector.broadcast %288 : vector<1x128xf32> to vector<8x128xf32>
      %290 = arith.mulf %26, %289 : vector<8x128xf32>
      %291 = arith.addf %287, %290 : vector<8x128xf32>
      %cst_35 = arith.constant 9.99999991E-38 : f32
      %292 = vector.broadcast %cst_35 : f32 to vector<8x128xf32>
      %293 = arith.maximumf %291, %292 : vector<8x128xf32>
      %294 = math.log %293 : vector<8x128xf32>
      %295 = vector.broadcast %257 : vector<1x128xf32> to vector<8x128xf32>
      %296 = arith.addf %295, %294 : vector<8x128xf32>
      %297 = arith.addf %296, %249 : vector<8x128xf32>
      %298 = arith.index_cast %38 : i32 to index
      %c5 = arith.constant 5 : index
      %c0_36 = arith.constant 0 : index
      %c0_37 = arith.constant 0 : index
      %299 = vector.load %arg3[%298, %c5, %c0_36, %c0_37] : memref<2x8x8x128xf32, #tpu.memory_space<vmem>>, vector<1x1x8x128xf32>
      %300 = vector.shape_cast %299 : vector<1x1x8x128xf32> to vector<8x128xf32>
      %301 = vector.extract_strided_slice %41 {offsets = [5, 0], sizes = [1, 128], strides = [1, 1]} : vector<8x128xi32> to vector<1x128xi32>
      %302 = vector.broadcast %301 : vector<1x128xi32> to vector<8x128xi32>
      %303 = arith.cmpi eq, %302, %30 : vector<8x128xi32>
      %cst_38 = arith.constant 0.000000e+00 : f32
      %304 = vector.broadcast %cst_38 : f32 to vector<8x128xf32>
      %305 = arith.select %303, %300, %304 : vector<8x128xi1>, vector<8x128xf32>
      %306 = arith.addf %255, %305 : vector<8x128xf32>
      %cst_39 = arith.constant dense<0xFF800000> : vector<128xf32>
      %307 = vector.multi_reduction <maximumf>, %297, %cst_39 [0] : vector<8x128xf32> to vector<128xf32>
      %308 = vector.shape_cast %307 : vector<128xf32> to vector<1x128xf32>
      %309 = vector.broadcast %308 : vector<1x128xf32> to vector<8x128xf32>
      %310 = arith.subf %297, %309 : vector<8x128xf32>
      %311 = math.exp %310 : vector<8x128xf32>
      %312 = vector.extract_strided_slice %311 {offsets = [0, 0], sizes = [1, 128], strides = [1, 1]} : vector<8x128xf32> to vector<1x128xf32>
      %313 = vector.broadcast %312 : vector<1x128xf32> to vector<8x128xf32>
      %314 = arith.mulf %5, %313 : vector<8x128xf32>
      %315 = vector.extract_strided_slice %311 {offsets = [1, 0], sizes = [1, 128], strides = [1, 1]} : vector<8x128xf32> to vector<1x128xf32>
      %316 = vector.broadcast %315 : vector<1x128xf32> to vector<8x128xf32>
      %317 = arith.mulf %8, %316 : vector<8x128xf32>
      %318 = arith.addf %314, %317 : vector<8x128xf32>
      %319 = vector.extract_strided_slice %311 {offsets = [2, 0], sizes = [1, 128], strides = [1, 1]} : vector<8x128xf32> to vector<1x128xf32>
      %320 = vector.broadcast %319 : vector<1x128xf32> to vector<8x128xf32>
      %321 = arith.mulf %11, %320 : vector<8x128xf32>
      %322 = arith.addf %318, %321 : vector<8x128xf32>
      %323 = vector.extract_strided_slice %311 {offsets = [3, 0], sizes = [1, 128], strides = [1, 1]} : vector<8x128xf32> to vector<1x128xf32>
      %324 = vector.broadcast %323 : vector<1x128xf32> to vector<8x128xf32>
      %325 = arith.mulf %14, %324 : vector<8x128xf32>
      %326 = arith.addf %322, %325 : vector<8x128xf32>
      %327 = vector.extract_strided_slice %311 {offsets = [4, 0], sizes = [1, 128], strides = [1, 1]} : vector<8x128xf32> to vector<1x128xf32>
      %328 = vector.broadcast %327 : vector<1x128xf32> to vector<8x128xf32>
      %329 = arith.mulf %17, %328 : vector<8x128xf32>
      %330 = arith.addf %326, %329 : vector<8x128xf32>
      %331 = vector.extract_strided_slice %311 {offsets = [5, 0], sizes = [1, 128], strides = [1, 1]} : vector<8x128xf32> to vector<1x128xf32>
      %332 = vector.broadcast %331 : vector<1x128xf32> to vector<8x128xf32>
      %333 = arith.mulf %20, %332 : vector<8x128xf32>
      %334 = arith.addf %330, %333 : vector<8x128xf32>
      %335 = vector.extract_strided_slice %311 {offsets = [6, 0], sizes = [1, 128], strides = [1, 1]} : vector<8x128xf32> to vector<1x128xf32>
      %336 = vector.broadcast %335 : vector<1x128xf32> to vector<8x128xf32>
      %337 = arith.mulf %23, %336 : vector<8x128xf32>
      %338 = arith.addf %334, %337 : vector<8x128xf32>
      %339 = vector.extract_strided_slice %311 {offsets = [7, 0], sizes = [1, 128], strides = [1, 1]} : vector<8x128xf32> to vector<1x128xf32>
      %340 = vector.broadcast %339 : vector<1x128xf32> to vector<8x128xf32>
      %341 = arith.mulf %26, %340 : vector<8x128xf32>
      %342 = arith.addf %338, %341 : vector<8x128xf32>
      %cst_40 = arith.constant 9.99999991E-38 : f32
      %343 = vector.broadcast %cst_40 : f32 to vector<8x128xf32>
      %344 = arith.maximumf %342, %343 : vector<8x128xf32>
      %345 = math.log %344 : vector<8x128xf32>
      %346 = vector.broadcast %308 : vector<1x128xf32> to vector<8x128xf32>
      %347 = arith.addf %346, %345 : vector<8x128xf32>
      %348 = arith.addf %347, %300 : vector<8x128xf32>
      %349 = arith.index_cast %38 : i32 to index
      %c6 = arith.constant 6 : index
      %c0_41 = arith.constant 0 : index
      %c0_42 = arith.constant 0 : index
      %350 = vector.load %arg3[%349, %c6, %c0_41, %c0_42] : memref<2x8x8x128xf32, #tpu.memory_space<vmem>>, vector<1x1x8x128xf32>
      %351 = vector.shape_cast %350 : vector<1x1x8x128xf32> to vector<8x128xf32>
      %352 = vector.extract_strided_slice %41 {offsets = [6, 0], sizes = [1, 128], strides = [1, 1]} : vector<8x128xi32> to vector<1x128xi32>
      %353 = vector.broadcast %352 : vector<1x128xi32> to vector<8x128xi32>
      %354 = arith.cmpi eq, %353, %30 : vector<8x128xi32>
      %cst_43 = arith.constant 0.000000e+00 : f32
      %355 = vector.broadcast %cst_43 : f32 to vector<8x128xf32>
      %356 = arith.select %354, %351, %355 : vector<8x128xi1>, vector<8x128xf32>
      %357 = arith.addf %306, %356 : vector<8x128xf32>
      %cst_44 = arith.constant dense<0xFF800000> : vector<128xf32>
      %358 = vector.multi_reduction <maximumf>, %348, %cst_44 [0] : vector<8x128xf32> to vector<128xf32>
      %359 = vector.shape_cast %358 : vector<128xf32> to vector<1x128xf32>
      %360 = vector.broadcast %359 : vector<1x128xf32> to vector<8x128xf32>
      %361 = arith.subf %348, %360 : vector<8x128xf32>
      %362 = math.exp %361 : vector<8x128xf32>
      %363 = vector.extract_strided_slice %362 {offsets = [0, 0], sizes = [1, 128], strides = [1, 1]} : vector<8x128xf32> to vector<1x128xf32>
      %364 = vector.broadcast %363 : vector<1x128xf32> to vector<8x128xf32>
      %365 = arith.mulf %5, %364 : vector<8x128xf32>
      %366 = vector.extract_strided_slice %362 {offsets = [1, 0], sizes = [1, 128], strides = [1, 1]} : vector<8x128xf32> to vector<1x128xf32>
      %367 = vector.broadcast %366 : vector<1x128xf32> to vector<8x128xf32>
      %368 = arith.mulf %8, %367 : vector<8x128xf32>
      %369 = arith.addf %365, %368 : vector<8x128xf32>
      %370 = vector.extract_strided_slice %362 {offsets = [2, 0], sizes = [1, 128], strides = [1, 1]} : vector<8x128xf32> to vector<1x128xf32>
      %371 = vector.broadcast %370 : vector<1x128xf32> to vector<8x128xf32>
      %372 = arith.mulf %11, %371 : vector<8x128xf32>
      %373 = arith.addf %369, %372 : vector<8x128xf32>
      %374 = vector.extract_strided_slice %362 {offsets = [3, 0], sizes = [1, 128], strides = [1, 1]} : vector<8x128xf32> to vector<1x128xf32>
      %375 = vector.broadcast %374 : vector<1x128xf32> to vector<8x128xf32>
      %376 = arith.mulf %14, %375 : vector<8x128xf32>
      %377 = arith.addf %373, %376 : vector<8x128xf32>
      %378 = vector.extract_strided_slice %362 {offsets = [4, 0], sizes = [1, 128], strides = [1, 1]} : vector<8x128xf32> to vector<1x128xf32>
      %379 = vector.broadcast %378 : vector<1x128xf32> to vector<8x128xf32>
      %380 = arith.mulf %17, %379 : vector<8x128xf32>
      %381 = arith.addf %377, %380 : vector<8x128xf32>
      %382 = vector.extract_strided_slice %362 {offsets = [5, 0], sizes = [1, 128], strides = [1, 1]} : vector<8x128xf32> to vector<1x128xf32>
      %383 = vector.broadcast %382 : vector<1x128xf32> to vector<8x128xf32>
      %384 = arith.mulf %20, %383 : vector<8x128xf32>
      %385 = arith.addf %381, %384 : vector<8x128xf32>
      %386 = vector.extract_strided_slice %362 {offsets = [6, 0], sizes = [1, 128], strides = [1, 1]} : vector<8x128xf32> to vector<1x128xf32>
      %387 = vector.broadcast %386 : vector<1x128xf32> to vector<8x128xf32>
      %388 = arith.mulf %23, %387 : vector<8x128xf32>
      %389 = arith.addf %385, %388 : vector<8x128xf32>
      %390 = vector.extract_strided_slice %362 {offsets = [7, 0], sizes = [1, 128], strides = [1, 1]} : vector<8x128xf32> to vector<1x128xf32>
      %391 = vector.broadcast %390 : vector<1x128xf32> to vector<8x128xf32>
      %392 = arith.mulf %26, %391 : vector<8x128xf32>
      %393 = arith.addf %389, %392 : vector<8x128xf32>
      %cst_45 = arith.constant 9.99999991E-38 : f32
      %394 = vector.broadcast %cst_45 : f32 to vector<8x128xf32>
      %395 = arith.maximumf %393, %394 : vector<8x128xf32>
      %396 = math.log %395 : vector<8x128xf32>
      %397 = vector.broadcast %359 : vector<1x128xf32> to vector<8x128xf32>
      %398 = arith.addf %397, %396 : vector<8x128xf32>
      %399 = arith.addf %398, %351 : vector<8x128xf32>
      %400 = arith.index_cast %38 : i32 to index
      %c7 = arith.constant 7 : index
      %c0_46 = arith.constant 0 : index
      %c0_47 = arith.constant 0 : index
      %401 = vector.load %arg3[%400, %c7, %c0_46, %c0_47] : memref<2x8x8x128xf32, #tpu.memory_space<vmem>>, vector<1x1x8x128xf32>
      %402 = vector.shape_cast %401 : vector<1x1x8x128xf32> to vector<8x128xf32>
      %403 = vector.extract_strided_slice %41 {offsets = [7, 0], sizes = [1, 128], strides = [1, 1]} : vector<8x128xi32> to vector<1x128xi32>
      %404 = vector.broadcast %403 : vector<1x128xi32> to vector<8x128xi32>
      %405 = arith.cmpi eq, %404, %30 : vector<8x128xi32>
      %cst_48 = arith.constant 0.000000e+00 : f32
      %406 = vector.broadcast %cst_48 : f32 to vector<8x128xf32>
      %407 = arith.select %405, %402, %406 : vector<8x128xi1>, vector<8x128xf32>
      %408 = arith.addf %357, %407 : vector<8x128xf32>
      %cst_49 = arith.constant dense<0xFF800000> : vector<128xf32>
      %409 = vector.multi_reduction <maximumf>, %399, %cst_49 [0] : vector<8x128xf32> to vector<128xf32>
      %410 = vector.shape_cast %409 : vector<128xf32> to vector<1x128xf32>
      %411 = vector.broadcast %410 : vector<1x128xf32> to vector<8x128xf32>
      %412 = arith.subf %399, %411 : vector<8x128xf32>
      %413 = math.exp %412 : vector<8x128xf32>
      %414 = vector.extract_strided_slice %413 {offsets = [0, 0], sizes = [1, 128], strides = [1, 1]} : vector<8x128xf32> to vector<1x128xf32>
      %415 = vector.broadcast %414 : vector<1x128xf32> to vector<8x128xf32>
      %416 = arith.mulf %5, %415 : vector<8x128xf32>
      %417 = vector.extract_strided_slice %413 {offsets = [1, 0], sizes = [1, 128], strides = [1, 1]} : vector<8x128xf32> to vector<1x128xf32>
      %418 = vector.broadcast %417 : vector<1x128xf32> to vector<8x128xf32>
      %419 = arith.mulf %8, %418 : vector<8x128xf32>
      %420 = arith.addf %416, %419 : vector<8x128xf32>
      %421 = vector.extract_strided_slice %413 {offsets = [2, 0], sizes = [1, 128], strides = [1, 1]} : vector<8x128xf32> to vector<1x128xf32>
      %422 = vector.broadcast %421 : vector<1x128xf32> to vector<8x128xf32>
      %423 = arith.mulf %11, %422 : vector<8x128xf32>
      %424 = arith.addf %420, %423 : vector<8x128xf32>
      %425 = vector.extract_strided_slice %413 {offsets = [3, 0], sizes = [1, 128], strides = [1, 1]} : vector<8x128xf32> to vector<1x128xf32>
      %426 = vector.broadcast %425 : vector<1x128xf32> to vector<8x128xf32>
      %427 = arith.mulf %14, %426 : vector<8x128xf32>
      %428 = arith.addf %424, %427 : vector<8x128xf32>
      %429 = vector.extract_strided_slice %413 {offsets = [4, 0], sizes = [1, 128], strides = [1, 1]} : vector<8x128xf32> to vector<1x128xf32>
      %430 = vector.broadcast %429 : vector<1x128xf32> to vector<8x128xf32>
      %431 = arith.mulf %17, %430 : vector<8x128xf32>
      %432 = arith.addf %428, %431 : vector<8x128xf32>
      %433 = vector.extract_strided_slice %413 {offsets = [5, 0], sizes = [1, 128], strides = [1, 1]} : vector<8x128xf32> to vector<1x128xf32>
      %434 = vector.broadcast %433 : vector<1x128xf32> to vector<8x128xf32>
      %435 = arith.mulf %20, %434 : vector<8x128xf32>
      %436 = arith.addf %432, %435 : vector<8x128xf32>
      %437 = vector.extract_strided_slice %413 {offsets = [6, 0], sizes = [1, 128], strides = [1, 1]} : vector<8x128xf32> to vector<1x128xf32>
      %438 = vector.broadcast %437 : vector<1x128xf32> to vector<8x128xf32>
      %439 = arith.mulf %23, %438 : vector<8x128xf32>
      %440 = arith.addf %436, %439 : vector<8x128xf32>
      %441 = vector.extract_strided_slice %413 {offsets = [7, 0], sizes = [1, 128], strides = [1, 1]} : vector<8x128xf32> to vector<1x128xf32>
      %442 = vector.broadcast %441 : vector<1x128xf32> to vector<8x128xf32>
      %443 = arith.mulf %26, %442 : vector<8x128xf32>
      %444 = arith.addf %440, %443 : vector<8x128xf32>
      %cst_50 = arith.constant 9.99999991E-38 : f32
      %445 = vector.broadcast %cst_50 : f32 to vector<8x128xf32>
      %446 = arith.maximumf %444, %445 : vector<8x128xf32>
      %447 = math.log %446 : vector<8x128xf32>
      %448 = vector.broadcast %410 : vector<1x128xf32> to vector<8x128xf32>
      %449 = arith.addf %448, %447 : vector<8x128xf32>
      %450 = arith.addf %449, %402 : vector<8x128xf32>
      %451 = arith.addf %450, %29 : vector<8x128xf32>
      %cst_51 = arith.constant dense<0xFF800000> : vector<128xf32>
      %452 = vector.multi_reduction <maximumf>, %451, %cst_51 [0] : vector<8x128xf32> to vector<128xf32>
      %453 = vector.shape_cast %452 : vector<128xf32> to vector<1x128xf32>
      %454 = vector.broadcast %453 : vector<1x128xf32> to vector<8x128xf32>
      %455 = arith.subf %451, %454 : vector<8x128xf32>
      %456 = math.exp %455 : vector<8x128xf32>
      %cst_52 = arith.constant dense<0.000000e+00> : vector<128xf32>
      %457 = vector.multi_reduction <add>, %456, %cst_52 [0] : vector<8x128xf32> to vector<128xf32>
      %458 = vector.shape_cast %457 : vector<128xf32> to vector<1x128xf32>
      %459 = math.log %458 : vector<1x128xf32>
      %460 = arith.addf %453, %459 : vector<1x128xf32>
      %cst_53 = arith.constant dense<0.000000e+00> : vector<128xf32>
      %461 = vector.multi_reduction <add>, %408, %cst_53 [0] : vector<8x128xf32> to vector<128xf32>
      %462 = vector.shape_cast %461 : vector<128xf32> to vector<1x128xf32>
      %463 = arith.subf %460, %462 : vector<1x128xf32>
      %464 = arith.index_cast %38 : i32 to index
      %c0_54 = arith.constant 0 : index
      %c0_55 = arith.constant 0 : index
      %465 = vector.load %arg5[%464, %c0_54, %c0_55] : memref<2x1x128xf32, #tpu.memory_space<vmem>>, vector<1x1x128xf32>
      %466 = vector.shape_cast %465 : vector<1x1x128xf32> to vector<1x128xf32>
      %467 = vector.shape_cast %463 : vector<1x128xf32> to vector<1x1x128xf32>
      tpu.vector_store %arg5[%464, %c0_54, %c0_55], %467 {strides = array<i32>} : memref<2x1x128xf32, #tpu.memory_space<vmem>>, vector<1x1x128xf32>,
    }
    %c2_i32_4 = arith.constant 2 : i32
    return
  }
  func.func @transform_0(%arg0: i32) -> (i32, i32) {
    %c0_i32 = arith.constant 0 : i32
    %c0_i32_0 = arith.constant 0 : i32
    %c0_i32_1 = arith.constant 0 : i32
    return %c0_i32, %c0_i32_0 : i32, i32
  }
  func.func @transform_1(%arg0: i32) -> (i32, i32) {
    %c0_i32 = arith.constant 0 : i32
    %c0_i32_0 = arith.constant 0 : i32
    %c0_i32_1 = arith.constant 0 : i32
    return %c0_i32, %c0_i32_0 : i32, i32
  }
  func.func @transform_2(%arg0: i32) -> (i32, i32, i32, i32) {
    %c0_i32 = arith.constant 0 : i32
    %c0_i32_0 = arith.constant 0 : i32
    %c0_i32_1 = arith.constant 0 : i32
    %c0_i32_2 = arith.constant 0 : i32
    return %arg0, %c0_i32, %c0_i32_0, %c0_i32_1 : i32, i32, i32, i32
  }
  func.func @transform_3(%arg0: i32) -> (i32, i32, i32) {
    %c0_i32 = arith.constant 0 : i32
    %c0_i32_0 = arith.constant 0 : i32
    %c0_i32_1 = arith.constant 0 : i32
    return %arg0, %c0_i32, %c0_i32_0 : i32, i32, i32
  }
  func.func @transform_4(%arg0: i32) -> (i32, i32, i32) {
    %c0_i32 = arith.constant 0 : i32
    %c0_i32_0 = arith.constant 0 : i32
    %c0_i32_1 = arith.constant 0 : i32
    return %arg0, %c0_i32, %c0_i32_0 : i32, i32, i32
  }
}

</mosaic_0001>

<llo_original>
// kernel: tpu_custom_call.1
$region0: #{tpu_custom_call.1}
  #allocation0 [shape = 'u32[]', space=smem, size = 0x4, offset = 0x4, fixed_abs, tag = 'smem constant byte address 0x4 - core index']
  #allocation1 [shape = 'u32[144,128]{1,0:T(1,128)}', space=vmem, size = 0x12000, scoped, tag = 'internal scratch']
  %s0 = inlined_call_operand.hbm [shape: f32[8,8], index: 0, kind: input, shape index: {}]
  %s1 = inlined_call_operand.hbm [shape: f32[8,8], index: 1, kind: input, shape index: {}]
  %s2 = inlined_call_operand.hbm [shape: f32[4,8,8,128], index: 2, kind: input, shape index: {}]
  %s3 = inlined_call_operand.hbm [shape: s32[4,8,128], index: 3, kind: input, shape index: {}]
  %s4 = inlined_call_operand.hbm [shape: f32[4,1,128], index: 4, kind: output, shape index: {}]
  %s5 = sld [smem:[#allocation0]]
  $region72: #{tpu_custom_call.1} parent=0
    _
  %s7 = ssub.s32 1, %s5
  %s8 = scalar_select 0, %s7, %s5
  $region1: #{tpu_custom_call.1} parent=0
    #allocation2 [shape = 'u8[4096]{0}', space=vmem, size = 0x1000, scoped, tag = 'input window, operand 0, single buffered']
    #allocation3 [shape = 's32[2]{0}', space=sflag, size = 0x8, scoped, tag = 'scoped memory for tpu_custom_call.1']
    #allocation4 [shape = 's32[2]{0}', space=sflag, size = 0x8, scoped, tag = 'scoped memory for tpu_custom_call.1']
    #allocation5 [shape = 'u8[4096]{0}', space=vmem, size = 0x1000, scoped, tag = 'input window, operand 1, single buffered']
    #allocation6 [shape = 's32[1]{0}', space=sflag, size = 0x4, scoped, tag = 'scoped memory for tpu_custom_call.1']
    #allocation7 [shape = 'u8[131072]{0}', space=vmem, size = 0x20000, scoped, tag = 'input window, operand 2']
    #allocation8 [shape = 'u8[16384]{0}', space=vmem, size = 0x4000, scoped, tag = 'input window, operand 3']
    #allocation9 [shape = 'u8[2048]{0}', space=vmem, size = 0x800, scoped, tag = 'output window, operand 0']
    %9 = vsyncpa [#allocation3], 0
    %10 = vsyncpa [#allocation6], 0
    %11 = vsyncpa [#allocation4], 0
    %s12 = scalar_lea.sflag [#allocation4], 1
    %13 = vsyncpa %s12, 0
    loop: start=0, step=1, limit=4
    $region2: #{tpu_custom_call.1} parent=1 // loop_pre_header
      _
    $region3: #{tpu_custom_call.1} parent=1 // loop_header
      %s15 = sphi 0, %s19
      %p16 = scmp.ge.s32.totalorder %s15, 4
      %s23 = sphi 0, %s23
      %s25 = sphi 0, %s23
      %s26 = sphi 0, %s25
      %s40 = sphi 0, %s26
      %s44 = sphi 0, %s44
      %s46 = sphi 0, %s44
      %s47 = sphi 0, %s46
      %s61 = sphi 0, %s47
      %s67 = sphi 0, %s69
      %s70 = sphi 0, %s67
      %s71 = sphi 0, %s70
      %s87 = sphi 0, %s71
      %s93 = sphi 0, %s95
      %s96 = sphi 0, %s93
      %s97 = sphi 0, %s96
      %s113 = sphi 0, %s97
      %s119 = sphi 0, %s121
      %s122 = sphi 0, %s119
      %s123 = sphi 0, %s122
      %s139 = sphi 0, %s123
    $region4: #{tpu_custom_call.1} parent=1 // loop_header_branch
      %18 = sbr.rel (%p16) target = $region8
    $region5: #{tpu_custom_call.1} parent=1 // loop_body
      %s20 = ssub.s32 %s15, 1
      %s21 = ssub.s32 %s15, 2
      %s22 = sadd.s32 %s15, 1
      %s24 = sadd.s32 %s23, 1
      %p27 = scmp.eq.s32.totalorder %s15, 1
      %p28 = scmp.ne.s32.totalorder %s23, %s25
      %p29 = scmp.eq.s32.totalorder %s15, 0
      %p30 = por %p28, %p29
      %p31 = scmp.ne.s32.totalorder %s23, %s25
      %p32 = scmp.eq.s32.totalorder %s20, 1
      %p33 = por %p31, %p32
      %p34 = scmp.ne.s32.totalorder %s25, %s26
      %p35 = scmp.eq.s32.totalorder %s20, 0
      %p36 = por %p34, %p35
      %p37 = scmp.ne.s32.totalorder %s25, %s26
      %p38 = scmp.eq.s32.totalorder %s21, 1
      %p39 = por %p37, %p38
      %p41 = scmp.ne.s32.totalorder %s26, %s40
      %p42 = scmp.eq.s32.totalorder %s21, 0
      %p43 = por %p41, %p42
      %s45 = sadd.s32 %s44, 1
      %p48 = scmp.eq.s32.totalorder %s15, 1
      %p49 = scmp.ne.s32.totalorder %s44, %s46
      %p50 = scmp.eq.s32.totalorder %s15, 0
      %p51 = por %p49, %p50
      %p52 = scmp.ne.s32.totalorder %s44, %s46
      %p53 = scmp.eq.s32.totalorder %s20, 1
      %p54 = por %p52, %p53
      %p55 = scmp.ne.s32.totalorder %s46, %s47
      %p56 = scmp.eq.s32.totalorder %s20, 0
      %p57 = por %p55, %p56
      %p58 = scmp.ne.s32.totalorder %s46, %s47
      %p59 = scmp.eq.s32.totalorder %s21, 1
      %p60 = por %p58, %p59
      %p62 = scmp.ne.s32.totalorder %s47, %s61
      %p63 = scmp.eq.s32.totalorder %s21, 0
      %p64 = por %p62, %p63
      %s65 = ssub.s32 %s15, %s22
      %p66 = scmp.eq.s32.totalorder %s65, 0
      %s68 = sadd.s32 %s67, 1
      %s69 = scalar_select %p66, %s67, %s68
      %p72 = pneg %p66
      %p73 = scmp.eq.s32.totalorder %s15, 1
      %p74 = por %p72, %p73
      %p75 = scmp.ne.s32.totalorder %s67, %s70
      %p76 = scmp.eq.s32.totalorder %s15, 0
      %p77 = por %p75, %p76
      %p78 = scmp.ne.s32.totalorder %s67, %s70
      %p79 = scmp.eq.s32.totalorder %s20, 1
      %p80 = por %p78, %p79
      %p81 = scmp.ne.s32.totalorder %s70, %s71
      %p82 = scmp.eq.s32.totalorder %s20, 0
      %p83 = por %p81, %p82
      %p84 = scmp.ne.s32.totalorder %s70, %s71
      %p85 = scmp.eq.s32.totalorder %s21, 1
      %p86 = por %p84, %p85
      %p88 = scmp.ne.s32.totalorder %s71, %s87
      %p89 = scmp.eq.s32.totalorder %s21, 0
      %p90 = por %p88, %p89
      %s91 = ssub.s32 %s15, %s22
      %p92 = scmp.eq.s32.totalorder %s91, 0
      %s94 = sadd.s32 %s93, 1
      %s95 = scalar_select %p92, %s93, %s94
      %p98 = pneg %p92
      %p99 = scmp.eq.s32.totalorder %s15, 1
      %p100 = por %p98, %p99
      %p101 = scmp.ne.s32.totalorder %s93, %s96
      %p102 = scmp.eq.s32.totalorder %s15, 0
      %p103 = por %p101, %p102
      %p104 = scmp.ne.s32.totalorder %s93, %s96
      %p105 = scmp.eq.s32.totalorder %s20, 1
      %p106 = por %p104, %p105
      %p107 = scmp.ne.s32.totalorder %s96, %s97
      %p108 = scmp.eq.s32.totalorder %s20, 0
      %p109 = por %p107, %p108
      %p110 = scmp.ne.s32.totalorder %s96, %s97
      %p111 = scmp.eq.s32.totalorder %s21, 1
      %p112 = por %p110, %p111
      %p114 = scmp.ne.s32.totalorder %s97, %s113
      %p115 = scmp.eq.s32.totalorder %s21, 0
      %p116 = por %p114, %p115
      %s117 = ssub.s32 %s15, %s22
      %p118 = scmp.eq.s32.totalorder %s117, 0
      %s120 = sadd.s32 %s119, 1
      %s121 = scalar_select %p118, %s119, %s120
      %p124 = pneg %p118
      %p125 = scmp.eq.s32.totalorder %s15, 1
      %p126 = por %p124, %p125
      %p127 = scmp.ne.s32.totalorder %s119, %s122
      %p128 = scmp.eq.s32.totalorder %s15, 0
      %p129 = por %p127, %p128
      %p130 = scmp.ne.s32.totalorder %s119, %s122
      %p131 = scmp.eq.s32.totalorder %s20, 1
      %p132 = por %p130, %p131
      %p133 = scmp.ne.s32.totalorder %s122, %s123
      %p134 = scmp.eq.s32.totalorder %s20, 0
      %p135 = por %p133, %p134
      %p136 = scmp.ne.s32.totalorder %s122, %s123
      %p137 = scmp.eq.s32.totalorder %s21, 1
      %p138 = por %p136, %p137
      %p140 = scmp.ne.s32.totalorder %s123, %s139
      %p141 = scmp.eq.s32.totalorder %s21, 0
      %p142 = por %p140, %p141
      %p143 = scmp.le.s32.totalorder 1, %s15
      %p144 = scmp.lt.s32.totalorder %s15, 3
      %p145 = pnand %p143, %p144
      %p146 = pneg %p145
      // Predicated region
      $region9: #{tpu_custom_call.1} parent=5 // pred_check
        _
      $region10: #{tpu_custom_call.1} parent=5 // pred_check_branch
        %148 = sbr.rel (%p145) target = $region12
      $region11: #{tpu_custom_call.1} parent=5 // pred_region
        %s149 = ssub.s32 %s15, 1
        // Predicated region
        $region13: #{tpu_custom_call.1} parent=11 // pred_check
          %p150 = pneg %p36
        $region14: #{tpu_custom_call.1} parent=11 // pred_check_branch
          %152 = sbr.rel (%p150) target = $region16
        $region15: #{tpu_custom_call.1} parent=11 // pred_region
          %s154 = ssub.s32 128, 128
          %155 = vsyncadd [#allocation3], %s154
          %s157 = sshll.u32 [#allocation2], 4
          %s158 = int_to_ptr.vmem [resolvable:$true] %s157
          %160 = dma.hbm_to_vmem [thread:$0]  %s0, 128, %s158, [#allocation3]
        $region16: #{tpu_custom_call.1} parent=11 // pred_fallthru
          _
        // Predicated region
        $region17: #{tpu_custom_call.1} parent=11 // pred_check
          %p161 = pneg %p57
        $region18: #{tpu_custom_call.1} parent=11 // pred_check_branch
          %163 = sbr.rel (%p161) target = $region20
        $region19: #{tpu_custom_call.1} parent=11 // pred_region
          %s165 = ssub.s32 128, 128
          %166 = vsyncadd [#allocation6], %s165
          %s168 = sshll.u32 [#allocation5], 4
          %s169 = int_to_ptr.vmem [resolvable:$true] %s168
          %171 = dma.hbm_to_vmem [thread:$0]  %s1, 128, %s169, [#allocation6]
        $region20: #{tpu_custom_call.1} parent=11 // pred_fallthru
          _
      $region12: #{tpu_custom_call.1} parent=5 // pred_fallthru
        _
      %p172 = scmp.lt.s32.totalorder %s15, 2
      // Predicated region
      $region21: #{tpu_custom_call.1} parent=5 // pred_check
        %p173 = pneg %p172
      $region22: #{tpu_custom_call.1} parent=5 // pred_check_branch
        %175 = sbr.rel (%p173) target = $region24
      $region23: #{tpu_custom_call.1} parent=5 // pred_region
        // Predicated region
        $region25: #{tpu_custom_call.1} parent=23 // pred_check
          %p176 = pneg %p77
        $region26: #{tpu_custom_call.1} parent=23 // pred_check_branch
          %178 = sbr.rel (%p176) target = $region28
        $region27: #{tpu_custom_call.1} parent=23 // pred_region
          %s179 = sand.u32 %s15, 1
          %s180 = scalar_lea.sflag [#allocation3], %s179
          %s181 = sand.u32 %s67, 1
          %s182 = smul.addr %s181, 128
          %s183 = scalar_lea.vmem [#allocation7], %s182
          %s184 = smul.u32 2, %s15
          %s186 = ssub.s32 2048, 2048
          %187 = vsyncadd %s180, %s186
          %s188 = smul.addr %s184, 8
          %s189 = smul.addr %s188, 128
          %s190 = scalar_lea.hbm %s2, %s189
          %s191 = sshll.u32 %s183, 4
          %s192 = int_to_ptr.vmem [resolvable:$true] %s191
          %197 = dma.hbm_to_vmem [thread:$0]  %s190, 2048, %s192, %s180, 128, 128, 8
        $region28: #{tpu_custom_call.1} parent=23 // pred_fallthru
          _
        // Predicated region
        $region29: #{tpu_custom_call.1} parent=23 // pred_check
          %p198 = pneg %p103
        $region30: #{tpu_custom_call.1} parent=23 // pred_check_branch
          %200 = sbr.rel (%p198) target = $region32
        $region31: #{tpu_custom_call.1} parent=23 // pred_region
          %s201 = sand.u32 %s15, 1
          %s202 = scalar_lea.sflag [#allocation3], %s201
          %s203 = sand.u32 %s93, 1
          %s204 = smul.addr %s203, 16
          %s205 = scalar_lea.vmem [#allocation8], %s204
          %s206 = smul.u32 2, %s15
          %s208 = ssub.s32 256, 256
          %209 = vsyncadd %s202, %s208
          %s210 = smul.addr %s206, 128
          %s211 = scalar_lea.hbm %s3, %s210
          %s212 = sshll.u32 %s205, 4
          %s213 = int_to_ptr.vmem [resolvable:$true] %s212
          %218 = dma.hbm_to_vmem [thread:$0]  %s211, 256, %s213, %s202, 128, 128, 8
        $region32: #{tpu_custom_call.1} parent=23 // pred_fallthru
          _
      $region24: #{tpu_custom_call.1} parent=5 // pred_fallthru
        _
      %p219 = scmp.le.s32.totalorder 1, %s15
      %p220 = scmp.lt.s32.totalorder %s15, 3
      %p221 = pnand %p219, %p220
      %p222 = pneg %p221
      // Predicated region
      $region33: #{tpu_custom_call.1} parent=5 // pred_check
        _
      $region34: #{tpu_custom_call.1} parent=5 // pred_check_branch
        %224 = sbr.rel (%p221) target = $region36
      $region35: #{tpu_custom_call.1} parent=5 // pred_region
        %s225 = ssub.s32 %s15, 1
        // Predicated region
        $region37: #{tpu_custom_call.1} parent=35 // pred_check
          %p226 = pneg %p36
        $region38: #{tpu_custom_call.1} parent=35 // pred_check_branch
          %228 = sbr.rel (%p226) target = $region40
        $region39: #{tpu_custom_call.1} parent=35 // pred_region
          %229 = dma.done [#allocation3], 128
        $region40: #{tpu_custom_call.1} parent=35 // pred_fallthru
          _
        // Predicated region
        $region41: #{tpu_custom_call.1} parent=35 // pred_check
          %p230 = pneg %p57
        $region42: #{tpu_custom_call.1} parent=35 // pred_check_branch
          %232 = sbr.rel (%p230) target = $region44
        $region43: #{tpu_custom_call.1} parent=35 // pred_region
          %233 = dma.done [#allocation6], 128
        $region44: #{tpu_custom_call.1} parent=35 // pred_fallthru
          _
        %s234 = sand.u32 %s20, 1
        %s235 = scalar_lea.sflag [#allocation3], %s234
        %s236 = sand.u32 %s70, 1
        %s237 = smul.addr %s236, 128
        %s238 = scalar_lea.vmem [#allocation7], %s237
        // Predicated region
        $region45: #{tpu_custom_call.1} parent=35 // pred_check
          %p239 = pneg %p83
        $region46: #{tpu_custom_call.1} parent=35 // pred_check_branch
          %241 = sbr.rel (%p239) target = $region48
        $region47: #{tpu_custom_call.1} parent=35 // pred_region
          %242 = dma.done %s235, 2048
        $region48: #{tpu_custom_call.1} parent=35 // pred_fallthru
          _
        %s243 = sand.u32 %s20, 1
        %s244 = scalar_lea.sflag [#allocation3], %s243
        %s245 = sand.u32 %s96, 1
        %s246 = smul.addr %s245, 16
        %s247 = scalar_lea.vmem [#allocation8], %s246
        // Predicated region
        $region49: #{tpu_custom_call.1} parent=35 // pred_check
          %p248 = pneg %p109
        $region50: #{tpu_custom_call.1} parent=35 // pred_check_branch
          %250 = sbr.rel (%p248) target = $region52
        $region51: #{tpu_custom_call.1} parent=35 // pred_region
          %251 = dma.done %s244, 256
        $region52: #{tpu_custom_call.1} parent=35 // pred_fallthru
          _
        %p252 = pneg %p36
        %p253 = pneg %p33
        %p254 = pneg %p57
        %p255 = pneg %p54
        %s256 = sand.u32 %s20, 1
        %s257 = scalar_lea.sflag [#allocation3], %s256
        %s258 = sand.u32 %s70, 1
        %s259 = smul.addr %s258, 128
        %s260 = scalar_lea.vmem [#allocation7], %s259
        %p261 = pneg %p83
        %p262 = pneg %p80
        %s263 = sand.u32 %s20, 1
        %s264 = scalar_lea.sflag [#allocation3], %s263
        %s265 = sand.u32 %s96, 1
        %s266 = smul.addr %s265, 16
        %s267 = scalar_lea.vmem [#allocation8], %s266
        %p268 = pneg %p109
        %p269 = pneg %p106
        %p270 = pneg %p135
        %p271 = pneg %p132
        %s272 = sand.u32 %s122, 1
        %s273 = scalar_lea.sflag [#allocation4], %s272
        %s274 = sand.u32 %s122, 1
        %s275 = smul.addr %s274, 2
        %s276 = scalar_lea.vmem [#allocation9], %s275
        %s277 = smul.u32 2, %s20
        %s278 = smul.u32 2, %s20
        %s279 = smul.u32 2, %s20
        %v280 = vld [vmem:[#allocation2] sm:$0xff]
        %v281 = vld [vmem:[#allocation5] sm:$0xff]
        %v282 = vmul.f32 %v280, 1.442695
        %v283 = vpow.pop %v282
        %285 = vset.pattern.permute.xlu0 0
        %286 = vperm.xlu0 %285, %v283
        %v287 = vpop.permute.xlu0 %286
        %289 = vset.pattern.permute.xlu0 1
        %290 = vperm.xlu0 %289, %v283
        %v291 = vpop.permute.xlu0 %290
        %293 = vset.pattern.permute.xlu0 2
        %294 = vperm.xlu0 %293, %v283
        %v295 = vpop.permute.xlu0 %294
        %297 = vset.pattern.permute.xlu0 3
        %298 = vperm.xlu0 %297, %v283
        %v299 = vpop.permute.xlu0 %298
        %301 = vset.pattern.permute.xlu0 4
        %302 = vperm.xlu0 %301, %v283
        %v303 = vpop.permute.xlu0 %302
        %305 = vset.pattern.permute.xlu0 5
        %306 = vperm.xlu0 %305, %v283
        %v307 = vpop.permute.xlu0 %306
        %309 = vset.pattern.permute.xlu0 6
        %310 = vperm.xlu0 %309, %v283
        %v311 = vpop.permute.xlu0 %310
        %313 = vset.pattern.permute.xlu0 7
        %314 = vperm.xlu0 %313, %v283
        %v315 = vpop.permute.xlu0 %314
        %318 = vset.pattern.permute.xlu0 7
        %319 = vperm.xlu0 %318, %v281
        %v320 = vpop.permute.xlu0 %319
        %v322 = vlaneseq
        %v323 = vshrl.u32 %v322, 7
        %vm324 = vcmp.eq.s32.totalorder %v323, 6
        %v325 = vsel %vm324, 0.0, -10000.0
        loop: start=0, step=1, limit=2
        $region53: #{tpu_custom_call.1} parent=35 // loop_pre_header
          _
        $region54: #{tpu_custom_call.1} parent=35 // loop_header
          %s327 = sphi 0, %s331
          %p328 = scmp.ge.s32.totalorder %s327, 2
        $region55: #{tpu_custom_call.1} parent=35 // loop_header_branch
          %330 = sbr.rel (%p328) target = $region59
        $region56: #{tpu_custom_call.1} parent=35 // loop_body
          %s332 = smul.u32 %s327, 8
          %s333 = scalar_lea.vmem %s247, %s332 [#allocation8]
          %v334 = vld [vmem:[%s333] sm:$0xff]
          %s335 = smul.u32 %s327, 64
          %s336 = scalar_lea.vmem %s238, %s335 [#allocation7]
          %v337 = vld [vmem:[%s336] sm:$0xff]
          %v338 = vlaneseq
          %v339 = vshrl.u32 %v338, 7
          %v340 = vsub.s32 0, %v339
          %v341 = vrot.slane %v334, %v340
          %vm342 = vcmp.eq.s32.totalorder %v341, %v323
          %v343 = vsel %vm342, %v337, 0.0
          %v344 = vadd.f32 %v343, 0.0
          %v345 = vrot.slane %v325, 4
          %v346 = vmax.f32 %v325, %v345
          %v347 = vrot.slane %v346, 2
          %v348 = vmax.f32 %v346, %v347
          %v349 = vrot.slane %v348, 1
          %v350 = vmax.f32 %v348, %v349
          %v351 = vsub.f32 %v325, %v350
          %v352 = vmul.f32 %v351, 1.442695
          %v353 = vpow.pop %v352
          %v354 = vlaneseq
          %v355 = vshrl.u32 %v354, 7
          %v356 = vsub.s32 0, %v355
          %v357 = vrot.slane %v353, %v356
          %v358 = vmul.f32 %v287, %v357
          %v359 = vlaneseq
          %v360 = vshrl.u32 %v359, 7
          %v361 = vsub.s32 1, %v360
          %v362 = vrot.slane %v353, %v361
          %v363 = vmul.f32 %v291, %v362
          %v364 = vadd.f32 %v358, %v363
          %v365 = vlaneseq
          %v366 = vshrl.u32 %v365, 7
          %v367 = vsub.s32 2, %v366
          %v368 = vrot.slane %v353, %v367
          %v369 = vmul.f32 %v295, %v368
          %v370 = vadd.f32 %v364, %v369
          %v371 = vlaneseq
          %v372 = vshrl.u32 %v371, 7
          %v373 = vsub.s32 3, %v372
          %v374 = vrot.slane %v353, %v373
          %v375 = vmul.f32 %v299, %v374
          %v376 = vadd.f32 %v370, %v375
          %v377 = vlaneseq
          %v378 = vshrl.u32 %v377, 7
          %v379 = vsub.s32 4, %v378
          %v380 = vrot.slane %v353, %v379
          %v381 = vmul.f32 %v303, %v380
          %v382 = vadd.f32 %v376, %v381
          %v383 = vlaneseq
          %v384 = vshrl.u32 %v383, 7
          %v385 = vsub.s32 5, %v384
          %v386 = vrot.slane %v353, %v385
          %v387 = vmul.f32 %v307, %v386
          %v388 = vadd.f32 %v382, %v387
          %v389 = vlaneseq
          %v390 = vshrl.u32 %v389, 7
          %v391 = vsub.s32 6, %v390
          %v392 = vrot.slane %v353, %v391
          %v393 = vmul.f32 %v311, %v392
          %v394 = vadd.f32 %v388, %v393
          %v395 = vlaneseq
          %v396 = vshrl.u32 %v395, 7
          %v397 = vsub.s32 7, %v396
          %v398 = vrot.slane %v353, %v397
          %v399 = vmul.f32 %v315, %v398
          %v400 = vadd.f32 %v394, %v399
          %v401 = vmax.f32 %v400, 1e-37
          %v402 = vlog2.pop %v401
          %v403 = vmul.f32 %v402, 0.6931472
          %v404 = vadd.f32 %v350, %v403
          %v405 = vadd.f32 %v404, %v337
          %s406 = sadd.s32 8, %s335
          %s407 = scalar_lea.vmem %s238, %s406 [#allocation7]
          %v408 = vld [vmem:[%s407] sm:$0xff]
          %v409 = vlaneseq
          %v410 = vshrl.u32 %v409, 7
          %v411 = vsub.s32 1, %v410
          %v412 = vrot.slane %v334, %v411
          %vm413 = vcmp.eq.s32.totalorder %v412, %v323
          %v414 = vsel %vm413, %v408, 0.0
          %v415 = vadd.f32 %v344, %v414
          %v416 = vrot.slane %v405, 4
          %v417 = vmax.f32 %v405, %v416
          %v418 = vrot.slane %v417, 2
          %v419 = vmax.f32 %v417, %v418
          %v420 = vrot.slane %v419, 1
          %v421 = vmax.f32 %v419, %v420
          %v422 = vsub.f32 %v405, %v421
          %v423 = vmul.f32 %v422, 1.442695
          %v424 = vpow.pop %v423
          %v425 = vlaneseq
          %v426 = vshrl.u32 %v425, 7
          %v427 = vsub.s32 0, %v426
          %v428 = vrot.slane %v424, %v427
          %v429 = vmul.f32 %v287, %v428
          %v430 = vlaneseq
          %v431 = vshrl.u32 %v430, 7
          %v432 = vsub.s32 1, %v431
          %v433 = vrot.slane %v424, %v432
          %v434 = vmul.f32 %v291, %v433
          %v435 = vadd.f32 %v429, %v434
          %v436 = vlaneseq
          %v437 = vshrl.u32 %v436, 7
          %v438 = vsub.s32 2, %v437
          %v439 = vrot.slane %v424, %v438
          %v440 = vmul.f32 %v295, %v439
          %v441 = vadd.f32 %v435, %v440
          %v442 = vlaneseq
          %v443 = vshrl.u32 %v442, 7
          %v444 = vsub.s32 3, %v443
          %v445 = vrot.slane %v424, %v444
          %v446 = vmul.f32 %v299, %v445
          %v447 = vadd.f32 %v441, %v446
          %v448 = vlaneseq
          %v449 = vshrl.u32 %v448, 7
          %v450 = vsub.s32 4, %v449
          %v451 = vrot.slane %v424, %v450
          %v452 = vmul.f32 %v303, %v451
          %v453 = vadd.f32 %v447, %v452
          %v454 = vlaneseq
          %v455 = vshrl.u32 %v454, 7
          %v456 = vsub.s32 5, %v455
          %v457 = vrot.slane %v424, %v456
          %v458 = vmul.f32 %v307, %v457
          %v459 = vadd.f32 %v453, %v458
          %v460 = vlaneseq
          %v461 = vshrl.u32 %v460, 7
          %v462 = vsub.s32 6, %v461
          %v463 = vrot.slane %v424, %v462
          %v464 = vmul.f32 %v311, %v463
          %v465 = vadd.f32 %v459, %v464
          %v466 = vlaneseq
          %v467 = vshrl.u32 %v466, 7
          %v468 = vsub.s32 7, %v467
          %v469 = vrot.slane %v424, %v468
          %v470 = vmul.f32 %v315, %v469
          %v471 = vadd.f32 %v465, %v470
          %v472 = vmax.f32 %v471, 1e-37
          %v473 = vlog2.pop %v472
          %v474 = vmul.f32 %v473, 0.6931472
          %v475 = vadd.f32 %v421, %v474
          %v476 = vadd.f32 %v475, %v408
          %s477 = sadd.s32 16, %s335
          %s478 = scalar_lea.vmem %s238, %s477 [#allocation7]
          %v479 = vld [vmem:[%s478] sm:$0xff]
          %v480 = vlaneseq
          %v481 = vshrl.u32 %v480, 7
          %v482 = vsub.s32 2, %v481
          %v483 = vrot.slane %v334, %v482
          %vm484 = vcmp.eq.s32.totalorder %v483, %v323
          %v485 = vsel %vm484, %v479, 0.0
          %v486 = vadd.f32 %v415, %v485
          %v487 = vrot.slane %v476, 4
          %v488 = vmax.f32 %v476, %v487
          %v489 = vrot.slane %v488, 2
          %v490 = vmax.f32 %v488, %v489
          %v491 = vrot.slane %v490, 1
          %v492 = vmax.f32 %v490, %v491
          %v493 = vsub.f32 %v476, %v492
          %v494 = vmul.f32 %v493, 1.442695
          %v495 = vpow.pop %v494
          %v496 = vlaneseq
          %v497 = vshrl.u32 %v496, 7
          %v498 = vsub.s32 0, %v497
          %v499 = vrot.slane %v495, %v498
          %v500 = vmul.f32 %v287, %v499
          %v501 = vlaneseq
          %v502 = vshrl.u32 %v501, 7
          %v503 = vsub.s32 1, %v502
          %v504 = vrot.slane %v495, %v503
          %v505 = vmul.f32 %v291, %v504
          %v506 = vadd.f32 %v500, %v505
          %v507 = vlaneseq
          %v508 = vshrl.u32 %v507, 7
          %v509 = vsub.s32 2, %v508
          %v510 = vrot.slane %v495, %v509
          %v511 = vmul.f32 %v295, %v510
          %v512 = vadd.f32 %v506, %v511
          %v513 = vlaneseq
          %v514 = vshrl.u32 %v513, 7
          %v515 = vsub.s32 3, %v514
          %v516 = vrot.slane %v495, %v515
          %v517 = vmul.f32 %v299, %v516
          %v518 = vadd.f32 %v512, %v517
          %v519 = vlaneseq
          %v520 = vshrl.u32 %v519, 7
          %v521 = vsub.s32 4, %v520
          %v522 = vrot.slane %v495, %v521
          %v523 = vmul.f32 %v303, %v522
          %v524 = vadd.f32 %v518, %v523
          %v525 = vlaneseq
          %v526 = vshrl.u32 %v525, 7
          %v527 = vsub.s32 5, %v526
          %v528 = vrot.slane %v495, %v527
          %v529 = vmul.f32 %v307, %v528
          %v530 = vadd.f32 %v524, %v529
          %v531 = vlaneseq
          %v532 = vshrl.u32 %v531, 7
          %v533 = vsub.s32 6, %v532
          %v534 = vrot.slane %v495, %v533
          %v535 = vmul.f32 %v311, %v534
          %v536 = vadd.f32 %v530, %v535
          %v537 = vlaneseq
          %v538 = vshrl.u32 %v537, 7
          %v539 = vsub.s32 7, %v538
          %v540 = vrot.slane %v495, %v539
          %v541 = vmul.f32 %v315, %v540
          %v542 = vadd.f32 %v536, %v541
          %v543 = vmax.f32 %v542, 1e-37
          %v544 = vlog2.pop %v543
          %v545 = vmul.f32 %v544, 0.6931472
          %v546 = vadd.f32 %v492, %v545
          %v547 = vadd.f32 %v546, %v479
          %s548 = sadd.s32 24, %s335
          %s549 = scalar_lea.vmem %s238, %s548 [#allocation7]
          %v550 = vld [vmem:[%s549] sm:$0xff]
          %v551 = vlaneseq
          %v552 = vshrl.u32 %v551, 7
          %v553 = vsub.s32 3, %v552
          %v554 = vrot.slane %v334, %v553
          %vm555 = vcmp.eq.s32.totalorder %v554, %v323
          %v556 = vsel %vm555, %v550, 0.0
          %v557 = vadd.f32 %v486, %v556
          %v558 = vrot.slane %v547, 4
          %v559 = vmax.f32 %v547, %v558
          %v560 = vrot.slane %v559, 2
          %v561 = vmax.f32 %v559, %v560
          %v562 = vrot.slane %v561, 1
          %v563 = vmax.f32 %v561, %v562
          %v564 = vsub.f32 %v547, %v563
          %v565 = vmul.f32 %v564, 1.442695
          %v566 = vpow.pop %v565
          %v567 = vlaneseq
          %v568 = vshrl.u32 %v567, 7
          %v569 = vsub.s32 0, %v568
          %v570 = vrot.slane %v566, %v569
          %v571 = vmul.f32 %v287, %v570
          %v572 = vlaneseq
          %v573 = vshrl.u32 %v572, 7
          %v574 = vsub.s32 1, %v573
          %v575 = vrot.slane %v566, %v574
          %v576 = vmul.f32 %v291, %v575
          %v577 = vadd.f32 %v571, %v576
          %v578 = vlaneseq
          %v579 = vshrl.u32 %v578, 7
          %v580 = vsub.s32 2, %v579
          %v581 = vrot.slane %v566, %v580
          %v582 = vmul.f32 %v295, %v581
          %v583 = vadd.f32 %v577, %v582
          %v584 = vlaneseq
          %v585 = vshrl.u32 %v584, 7
          %v586 = vsub.s32 3, %v585
          %v587 = vrot.slane %v566, %v586
          %v588 = vmul.f32 %v299, %v587
          %v589 = vadd.f32 %v583, %v588
          %v590 = vlaneseq
          %v591 = vshrl.u32 %v590, 7
          %v592 = vsub.s32 4, %v591
          %v593 = vrot.slane %v566, %v592
          %v594 = vmul.f32 %v303, %v593
          %v595 = vadd.f32 %v589, %v594
          %v596 = vlaneseq
          %v597 = vshrl.u32 %v596, 7
          %v598 = vsub.s32 5, %v597
          %v599 = vrot.slane %v566, %v598
          %v600 = vmul.f32 %v307, %v599
          %v601 = vadd.f32 %v595, %v600
          %v602 = vlaneseq
          %v603 = vshrl.u32 %v602, 7
          %v604 = vsub.s32 6, %v603
          %v605 = vrot.slane %v566, %v604
          %v606 = vmul.f32 %v311, %v605
          %v607 = vadd.f32 %v601, %v606
          %v608 = vlaneseq
          %v609 = vshrl.u32 %v608, 7
          %v610 = vsub.s32 7, %v609
          %v611 = vrot.slane %v566, %v610
          %v612 = vmul.f32 %v315, %v611
          %v613 = vadd.f32 %v607, %v612
          %v614 = vmax.f32 %v613, 1e-37
          %v615 = vlog2.pop %v614
          %v616 = vmul.f32 %v615, 0.6931472
          %v617 = vadd.f32 %v563, %v616
          %v618 = vadd.f32 %v617, %v550
          %s619 = sadd.s32 32, %s335
          %s620 = scalar_lea.vmem %s238, %s619 [#allocation7]
          %v621 = vld [vmem:[%s620] sm:$0xff]
          %v622 = vlaneseq
          %v623 = vshrl.u32 %v622, 7
          %v624 = vsub.s32 4, %v623
          %v625 = vrot.slane %v334, %v624
          %vm626 = vcmp.eq.s32.totalorder %v625, %v323
          %v627 = vsel %vm626, %v621, 0.0
          %v628 = vadd.f32 %v557, %v627
          %v629 = vrot.slane %v618, 4
          %v630 = vmax.f32 %v618, %v629
          %v631 = vrot.slane %v630, 2
          %v632 = vmax.f32 %v630, %v631
          %v633 = vrot.slane %v632, 1
          %v634 = vmax.f32 %v632, %v633
          %v635 = vsub.f32 %v618, %v634
          %v636 = vmul.f32 %v635, 1.442695
          %v637 = vpow.pop %v636
          %v638 = vlaneseq
          %v639 = vshrl.u32 %v638, 7
          %v640 = vsub.s32 0, %v639
          %v641 = vrot.slane %v637, %v640
          %v642 = vmul.f32 %v287, %v641
          %v643 = vlaneseq
          %v644 = vshrl.u32 %v643, 7
          %v645 = vsub.s32 1, %v644
          %v646 = vrot.slane %v637, %v645
          %v647 = vmul.f32 %v291, %v646
          %v648 = vadd.f32 %v642, %v647
          %v649 = vlaneseq
          %v650 = vshrl.u32 %v649, 7
          %v651 = vsub.s32 2, %v650
          %v652 = vrot.slane %v637, %v651
          %v653 = vmul.f32 %v295, %v652
          %v654 = vadd.f32 %v648, %v653
          %v655 = vlaneseq
          %v656 = vshrl.u32 %v655, 7
          %v657 = vsub.s32 3, %v656
          %v658 = vrot.slane %v637, %v657
          %v659 = vmul.f32 %v299, %v658
          %v660 = vadd.f32 %v654, %v659
          %v661 = vlaneseq
          %v662 = vshrl.u32 %v661, 7
          %v663 = vsub.s32 4, %v662
          %v664 = vrot.slane %v637, %v663
          %v665 = vmul.f32 %v303, %v664
          %v666 = vadd.f32 %v660, %v665
          %v667 = vlaneseq
          %v668 = vshrl.u32 %v667, 7
          %v669 = vsub.s32 5, %v668
          %v670 = vrot.slane %v637, %v669
          %v671 = vmul.f32 %v307, %v670
          %v672 = vadd.f32 %v666, %v671
          %v673 = vlaneseq
          %v674 = vshrl.u32 %v673, 7
          %v675 = vsub.s32 6, %v674
          %v676 = vrot.slane %v637, %v675
          %v677 = vmul.f32 %v311, %v676
          %v678 = vadd.f32 %v672, %v677
          %v679 = vlaneseq
          %v680 = vshrl.u32 %v679, 7
          %v681 = vsub.s32 7, %v680
          %v682 = vrot.slane %v637, %v681
          %v683 = vmul.f32 %v315, %v682
          %v684 = vadd.f32 %v678, %v683
          %v685 = vmax.f32 %v684, 1e-37
          %v686 = vlog2.pop %v685
          %v687 = vmul.f32 %v686, 0.6931472
          %v688 = vadd.f32 %v634, %v687
          %v689 = vadd.f32 %v688, %v621
          %s690 = sadd.s32 40, %s335
          %s691 = scalar_lea.vmem %s238, %s690 [#allocation7]
          %v692 = vld [vmem:[%s691] sm:$0xff]
          %v693 = vlaneseq
          %v694 = vshrl.u32 %v693, 7
          %v695 = vsub.s32 5, %v694
          %v696 = vrot.slane %v334, %v695
          %vm697 = vcmp.eq.s32.totalorder %v696, %v323
          %v698 = vsel %vm697, %v692, 0.0
          %v699 = vadd.f32 %v628, %v698
          %v700 = vrot.slane %v689, 4
          %v701 = vmax.f32 %v689, %v700
          %v702 = vrot.slane %v701, 2
          %v703 = vmax.f32 %v701, %v702
          %v704 = vrot.slane %v703, 1
          %v705 = vmax.f32 %v703, %v704
          %v706 = vsub.f32 %v689, %v705
          %v707 = vmul.f32 %v706, 1.442695
          %v708 = vpow.pop %v707
          %v709 = vlaneseq
          %v710 = vshrl.u32 %v709, 7
          %v711 = vsub.s32 0, %v710
          %v712 = vrot.slane %v708, %v711
          %v713 = vmul.f32 %v287, %v712
          %v714 = vlaneseq
          %v715 = vshrl.u32 %v714, 7
          %v716 = vsub.s32 1, %v715
          %v717 = vrot.slane %v708, %v716
          %v718 = vmul.f32 %v291, %v717
          %v719 = vadd.f32 %v713, %v718
          %v720 = vlaneseq
          %v721 = vshrl.u32 %v720, 7
          %v722 = vsub.s32 2, %v721
          %v723 = vrot.slane %v708, %v722
          %v724 = vmul.f32 %v295, %v723
          %v725 = vadd.f32 %v719, %v724
          %v726 = vlaneseq
          %v727 = vshrl.u32 %v726, 7
          %v728 = vsub.s32 3, %v727
          %v729 = vrot.slane %v708, %v728
          %v730 = vmul.f32 %v299, %v729
          %v731 = vadd.f32 %v725, %v730
          %v732 = vlaneseq
          %v733 = vshrl.u32 %v732, 7
          %v734 = vsub.s32 4, %v733
          %v735 = vrot.slane %v708, %v734
          %v736 = vmul.f32 %v303, %v735
          %v737 = vadd.f32 %v731, %v736
          %v738 = vlaneseq
          %v739 = vshrl.u32 %v738, 7
          %v740 = vsub.s32 5, %v739
          %v741 = vrot.slane %v708, %v740
          %v742 = vmul.f32 %v307, %v741
          %v743 = vadd.f32 %v737, %v742
          %v744 = vlaneseq
          %v745 = vshrl.u32 %v744, 7
          %v746 = vsub.s32 6, %v745
          %v747 = vrot.slane %v708, %v746
          %v748 = vmul.f32 %v311, %v747
          %v749 = vadd.f32 %v743, %v748
          %v750 = vlaneseq
          %v751 = vshrl.u32 %v750, 7
          %v752 = vsub.s32 7, %v751
          %v753 = vrot.slane %v708, %v752
          %v754 = vmul.f32 %v315, %v753
          %v755 = vadd.f32 %v749, %v754
          %v756 = vmax.f32 %v755, 1e-37
          %v757 = vlog2.pop %v756
          %v758 = vmul.f32 %v757, 0.6931472
          %v759 = vadd.f32 %v705, %v758
          %v760 = vadd.f32 %v759, %v692
          %s761 = sadd.s32 48, %s335
          %s762 = scalar_lea.vmem %s238, %s761 [#allocation7]
          %v763 = vld [vmem:[%s762] sm:$0xff]
          %v764 = vlaneseq
          %v765 = vshrl.u32 %v764, 7
          %v766 = vsub.s32 6, %v765
          %v767 = vrot.slane %v334, %v766
          %vm768 = vcmp.eq.s32.totalorder %v767, %v323
          %v769 = vsel %vm768, %v763, 0.0
          %v770 = vadd.f32 %v699, %v769
          %v771 = vrot.slane %v760, 4
          %v772 = vmax.f32 %v760, %v771
          %v773 = vrot.slane %v772, 2
          %v774 = vmax.f32 %v772, %v773
          %v775 = vrot.slane %v774, 1
          %v776 = vmax.f32 %v774, %v775
          %v777 = vsub.f32 %v760, %v776
          %v778 = vmul.f32 %v777, 1.442695
          %v779 = vpow.pop %v778
          %v780 = vlaneseq
          %v781 = vshrl.u32 %v780, 7
          %v782 = vsub.s32 0, %v781
          %v783 = vrot.slane %v779, %v782
          %v784 = vmul.f32 %v287, %v783
          %v785 = vlaneseq
          %v786 = vshrl.u32 %v785, 7
          %v787 = vsub.s32 1, %v786
          %v788 = vrot.slane %v779, %v787
          %v789 = vmul.f32 %v291, %v788
          %v790 = vadd.f32 %v784, %v789
          %v791 = vlaneseq
          %v792 = vshrl.u32 %v791, 7
          %v793 = vsub.s32 2, %v792
          %v794 = vrot.slane %v779, %v793
          %v795 = vmul.f32 %v295, %v794
          %v796 = vadd.f32 %v790, %v795
          %v797 = vlaneseq
          %v798 = vshrl.u32 %v797, 7
          %v799 = vsub.s32 3, %v798
          %v800 = vrot.slane %v779, %v799
          %v801 = vmul.f32 %v299, %v800
          %v802 = vadd.f32 %v796, %v801
          %v803 = vlaneseq
          %v804 = vshrl.u32 %v803, 7
          %v805 = vsub.s32 4, %v804
          %v806 = vrot.slane %v779, %v805
          %v807 = vmul.f32 %v303, %v806
          %v808 = vadd.f32 %v802, %v807
          %v809 = vlaneseq
          %v810 = vshrl.u32 %v809, 7
          %v811 = vsub.s32 5, %v810
          %v812 = vrot.slane %v779, %v811
          %v813 = vmul.f32 %v307, %v812
          %v814 = vadd.f32 %v808, %v813
          %v815 = vlaneseq
          %v816 = vshrl.u32 %v815, 7
          %v817 = vsub.s32 6, %v816
          %v818 = vrot.slane %v779, %v817
          %v819 = vmul.f32 %v311, %v818
          %v820 = vadd.f32 %v814, %v819
          %v821 = vlaneseq
          %v822 = vshrl.u32 %v821, 7
          %v823 = vsub.s32 7, %v822
          %v824 = vrot.slane %v779, %v823
          %v825 = vmul.f32 %v315, %v824
          %v826 = vadd.f32 %v820, %v825
          %v827 = vmax.f32 %v826, 1e-37
          %v828 = vlog2.pop %v827
          %v829 = vmul.f32 %v828, 0.6931472
          %v830 = vadd.f32 %v776, %v829
          %v831 = vadd.f32 %v830, %v763
          %s832 = sadd.s32 56, %s335
          %s833 = scalar_lea.vmem %s238, %s832 [#allocation7]
          %v834 = vld [vmem:[%s833] sm:$0xff]
          %v835 = vlaneseq
          %v836 = vshrl.u32 %v835, 7
          %v837 = vsub.s32 7, %v836
          %v838 = vrot.slane %v334, %v837
          %vm839 = vcmp.eq.s32.totalorder %v838, %v323
          %v840 = vsel %vm839, %v834, 0.0
          %v841 = vadd.f32 %v770, %v840
          %v842 = vrot.slane %v831, 4
          %v843 = vmax.f32 %v831, %v842
          %v844 = vrot.slane %v843, 2
          %v845 = vmax.f32 %v843, %v844
          %v846 = vrot.slane %v845, 1
          %v847 = vmax.f32 %v845, %v846
          %v848 = vsub.f32 %v831, %v847
          %v849 = vmul.f32 %v848, 1.442695
          %v850 = vpow.pop %v849
          %v851 = vlaneseq
          %v852 = vshrl.u32 %v851, 7
          %v853 = vsub.s32 0, %v852
          %v854 = vrot.slane %v850, %v853
          %v855 = vmul.f32 %v287, %v854
          %v856 = vlaneseq
          %v857 = vshrl.u32 %v856, 7
          %v858 = vsub.s32 1, %v857
          %v859 = vrot.slane %v850, %v858
          %v860 = vmul.f32 %v291, %v859
          %v861 = vadd.f32 %v855, %v860
          %v862 = vlaneseq
          %v863 = vshrl.u32 %v862, 7
          %v864 = vsub.s32 2, %v863
          %v865 = vrot.slane %v850, %v864
          %v866 = vmul.f32 %v295, %v865
          %v867 = vadd.f32 %v861, %v866
          %v868 = vlaneseq
          %v869 = vshrl.u32 %v868, 7
          %v870 = vsub.s32 3, %v869
          %v871 = vrot.slane %v850, %v870
          %v872 = vmul.f32 %v299, %v871
          %v873 = vadd.f32 %v867, %v872
          %v874 = vlaneseq
          %v875 = vshrl.u32 %v874, 7
          %v876 = vsub.s32 4, %v875
          %v877 = vrot.slane %v850, %v876
          %v878 = vmul.f32 %v303, %v877
          %v879 = vadd.f32 %v873, %v878
          %v880 = vlaneseq
          %v881 = vshrl.u32 %v880, 7
          %v882 = vsub.s32 5, %v881
          %v883 = vrot.slane %v850, %v882
          %v884 = vmul.f32 %v307, %v883
          %v885 = vadd.f32 %v879, %v884
          %v886 = vlaneseq
          %v887 = vshrl.u32 %v886, 7
          %v888 = vsub.s32 6, %v887
          %v889 = vrot.slane %v850, %v888
          %v890 = vmul.f32 %v311, %v889
          %v891 = vadd.f32 %v885, %v890
          %v892 = vlaneseq
          %v893 = vshrl.u32 %v892, 7
          %v894 = vsub.s32 7, %v893
          %v895 = vrot.slane %v850, %v894
          %v896 = vmul.f32 %v315, %v895
          %v897 = vadd.f32 %v891, %v896
          %v898 = vmax.f32 %v897, 1e-37
          %v899 = vlog2.pop %v898
          %v900 = vmul.f32 %v899, 0.6931472
          %v901 = vadd.f32 %v847, %v900
          %v902 = vadd.f32 %v901, %v834
          %v903 = vadd.f32 %v902, %v320
          %v904 = vrot.slane %v903, 4
          %v905 = vmax.f32 %v903, %v904
          %v906 = vrot.slane %v905, 2
          %v907 = vmax.f32 %v905, %v906
          %v908 = vrot.slane %v907, 1
          %v909 = vmax.f32 %v907, %v908
          %v910 = vsub.f32 %v903, %v909
          %v911 = vmul.f32 %v910, 1.442695
          %v912 = vpow.pop %v911
          %v913 = vrot.slane %v912, 4
          %v914 = vadd.f32 %v912, %v913
          %v915 = vrot.slane %v914, 2
          %v916 = vadd.f32 %v914, %v915
          %v917 = vrot.slane %v916, 1
          %v918 = vadd.f32 %v916, %v917
          %v919 = vlog2.pop %v918
          %v920 = vmul.f32 %v919, 0.6931472
          %v921 = vadd.f32 %v909, %v920
          %v922 = vrot.slane %v841, 4
          %v923 = vadd.f32 %v841, %v922
          %v924 = vrot.slane %v923, 2
          %v925 = vadd.f32 %v923, %v924
          %v926 = vrot.slane %v925, 1
          %v927 = vadd.f32 %v925, %v926
          %v928 = vsub.f32 %v921, %v927
          %s929 = scalar_lea.vmem %s276, %s327 [#allocation9]
          %930 = vst [vmem:[%s929] sm:$0x1] %v928
        $region57: #{tpu_custom_call.1} parent=35 // loop_footer
          %s331 = sadd.s32 1, %s327
        $region58: #{tpu_custom_call.1} parent=35 // loop_footer_branch
          %326 = sbr.rel target = $region54
        $region59: #{tpu_custom_call.1} parent=35 // loop_exit
          _
        %s931 = sand.u32 %s122, 1
        %s932 = scalar_lea.sflag [#allocation4], %s931
        %s933 = sand.u32 %s122, 1
        %s934 = smul.addr %s933, 2
        %s935 = scalar_lea.vmem [#allocation9], %s934
        // Predicated region
        $region60: #{tpu_custom_call.1} parent=35 // pred_check
          %p936 = pneg %p132
        $region61: #{tpu_custom_call.1} parent=35 // pred_check_branch
          %938 = sbr.rel (%p936) target = $region63
        $region62: #{tpu_custom_call.1} parent=35 // pred_region
          %s939 = smul.u32 2, %s20
          %s941 = ssub.s32 32, 32
          %942 = vsyncadd %s932, %s941
          %s943 = smul.addr %s939, 16
          %s944 = scalar_lea.hbm %s4, %s943
          %s945 = sshll.u32 %s935, 4
          %s946 = int_to_ptr.vmem [resolvable:$true] %s945
          %951 = dma.vmem_to_hbm [thread:$0]  %s946, 32, %s944, %s932, 16, 16, 1
        $region63: #{tpu_custom_call.1} parent=35 // pred_fallthru
          _
      $region36: #{tpu_custom_call.1} parent=5 // pred_fallthru
        _
      %p952 = scmp.le.s32.totalorder 2, %s15
      // Predicated region
      $region64: #{tpu_custom_call.1} parent=5 // pred_check
        %p953 = pneg %p952
      $region65: #{tpu_custom_call.1} parent=5 // pred_check_branch
        %955 = sbr.rel (%p953) target = $region67
      $region66: #{tpu_custom_call.1} parent=5 // pred_region
        %s956 = ssub.s32 %s15, 2
        // Predicated region
        $region68: #{tpu_custom_call.1} parent=66 // pred_check
          %p957 = pneg %p138
        $region69: #{tpu_custom_call.1} parent=66 // pred_check_branch
          %959 = sbr.rel (%p957) target = $region71
        $region70: #{tpu_custom_call.1} parent=66 // pred_region
          %s960 = sand.u32 %s123, 1
          %s961 = scalar_lea.sflag [#allocation4], %s960
          %s962 = sand.u32 %s123, 1
          %s963 = smul.addr %s962, 2
          %s964 = scalar_lea.vmem [#allocation9], %s963
          %965 = dma.done %s961, 32
        $region71: #{tpu_custom_call.1} parent=66 // pred_fallthru
          _
      $region67: #{tpu_custom_call.1} parent=5 // pred_fallthru
        _
    $region6: #{tpu_custom_call.1} parent=1 // loop_footer
      %s19 = sadd.s32 1, %s15
    $region7: #{tpu_custom_call.1} parent=1 // loop_footer_branch
      %14 = sbr.rel target = $region3
    $region8: #{tpu_custom_call.1} parent=1 // loop_exit
      _
    %966 = vsyncpa [#allocation3], 1
    %s967 = scalar_lea.sflag [#allocation3], 1
    %968 = vsyncpa %s967, 1
    %969 = vsyncpa [#allocation6], 1
    %970 = vsyncpa [#allocation4], 1
    %s971 = scalar_lea.sflag [#allocation4], 1
    %972 = vsyncpa %s971, 1

</llo_original>
